<compile_context>
chip_gen: v6e
topology: v6e:2x2x1
jax: 0.10.0
libtpu: 0.0.40
codegen_flags: <defaults>
</compile_context>

<pallas_src>
import functools
import math

import jax
import jax.numpy as jnp
from jax import lax
from jax.experimental import pallas as pl
from jax.experimental.pallas import tpu as pltpu


def subpixel_conv_kernel(x_ref, w_ref, b_ref, alpha_ref, o_ref, *, K, TH, W):
    """Fused KxK SAME conv + bias + PReLU for one (batch, row-band) tile.

    x_ref:     (1, Hp, Wp, Cin)   full padded NHWC image, bf16 (VMEM, resident per n)
    w_ref:     (K*K*Cin, Cout)    conv weights in im2col layout, bf16 (VMEM)
    b_ref:     (1, Cout)          bias, f32 (VMEM)
    alpha_ref: (1, Cout)          PReLU alpha per conv output channel, f32 (VMEM)
    o_ref:     (1, TH*W, Cout)    conv+bias+PReLU output band, bf16 (VMEM)
    """
    Cin = x_ref.shape[3]
    Cout = o_ref.shape[2]
    t = pl.program_id(1)
    row0 = pl.multiple_of(t * TH, TH)   # first padded input row of this band

    # im2col held in vregs (no VMEM scratch, no masked stores):
    # col[h*W + w, (kh*K + kw)*Cin + ci] = x[row0 + h + kh, w + kw, ci]
    taps = []
    for kh in range(K):
        band = x_ref[0, pl.ds(row0 + kh, TH), :, :]                  # (TH, Wp, Cin)
        for kw in range(K):
            taps.append(band[:, kw:kw + W, :].reshape(TH * W, Cin))  # (TH*W, Cin)
    col = jnp.concatenate(taps, axis=1)                              # (TH*W, K*K*Cin)

    # One fat MXU matmul: bf16 x bf16 -> f32 accumulate.
    acc = jnp.dot(col, w_ref[...], preferred_element_type=jnp.float32)
    acc = acc + b_ref[...]                                           # (1, Cout) bcast

    # PReLU with per-conv-output-channel alpha (exact for scalar and per-channel).
    y = jnp.where(acc > 0, acc, alpha_ref[...] * acc)
    o_ref[...] = y.reshape(1, TH * W, Cout).astype(o_ref.dtype)


def _pick_tile_h(H, W, cap=2048):
    """Largest divisor of H whose row band is MXU/store friendly.

    Prefers >= 2 bands per image (keeps both v7x TensorCores busy at batch 1) and
    TH*W a multiple of 16 (no padded sublanes in the bf16 matmul LHS)."""
    def ok(d, align, need_two):
        if H % d or d * W > cap:
            return False
        if need_two and H // d < 2:
            return False
        return (d * W) % align == 0

    for align, need_two in ((16, True), (8, True), (16, False), (8, False), (1, False)):
        cands = [d for d in range(1, H + 1) if ok(d, align, need_two)]
        if cands:
            return max(cands)
    return H


def _vmem_block_bytes(shape, dtype):
    """Physical VMEM bytes of a block including lane (128) / sublane padding."""
    itemsize = jnp.dtype(dtype).itemsize
    sublane = max(8, 32 // max(itemsize, 1))      # 8 for f32, 16 for bf16
    dims = list(shape)
    if len(dims) >= 1:
        dims[-1] = -(-dims[-1] // 128) * 128
    if len(dims) >= 2:
        dims[-2] = -(-dims[-2] // sublane) * sublane
    return math.prod(dims) * itemsize


def subpixel_conv_block(x_nchw, w_hwio, bias, alpha, *, scaling_factor):
    """Forward pass matching SubPixelConvolutionalBlock. Input/output are NCHW f32."""
    N, Cin, H, W = x_nchw.shape
    K = w_hwio.shape[0]
    Cout = w_hwio.shape[3]
    r = scaling_factor
    C = Cout // (r * r)
    pad = K // 2

    # NCHW -> NHWC, SAME padding, bf16 (MXU consumes bf16 anyway; accumulation is f32).
    x_nhwc = jnp.transpose(x_nchw, (0, 2, 3, 1)).astype(jnp.bfloat16)
    x_pad = jnp.pad(x_nhwc, ((0, 0), (pad, pad), (pad, pad), (0, 0)))
    Hp, Wp = H + 2 * pad, W + 2 * pad

    # Weights flattened to the im2col contraction layout (kh, kw, ci), bf16.
    w2d = w_hwio.reshape(K * K * Cin, Cout).astype(jnp.bfloat16)
    b2d = bias.reshape(1, Cout).astype(jnp.float32)

    # PReLU alpha per conv output channel: post-shuffle channel c covers conv channels
    # c*r*r + a*r + b.  Handles nn.PReLU() scalar default and per-channel alpha.
    alpha_arr = jnp.asarray(alpha, jnp.float32).reshape(-1)
    if alpha_arr.shape[0] == 1:
        alpha_row = jnp.broadcast_to(alpha_arr, (Cout,)).reshape(1, Cout)
    else:
        alpha_row = jnp.repeat(alpha_arr, r * r).reshape(1, Cout)

    TH = _pick_tile_h(H, W)
    num_t = H // TH

    kernel = functools.partial(subpixel_conv_kernel, K=K, TH=TH, W=W)

    grid_spec = pltpu.PrefetchScalarGridSpec(
        num_scalar_prefetch=0,
        grid=(N, num_t),
        in_specs=[
            # Full padded image per batch element; constant block index across the
            # row-band axis keeps it VMEM-resident instead of re-DMA'ing per band.
            pl.BlockSpec((1, Hp, Wp, Cin), lambda n, t: (n, 0, 0, 0)),
            pl.BlockSpec((K * K * Cin, Cout), lambda n, t: (0, 0)),
            pl.BlockSpec((1, Cout), lambda n, t: (0, 0)),
            pl.BlockSpec((1, Cout), lambda n, t: (0, 0)),
        ],
        out_specs=pl.BlockSpec((1, TH * W, Cout), lambda n, t: (n, t, 0)),
    )

    # VMEM budget from the real padded buffer footprints (double-buffered in/out) plus
    # the in-vreg im2col / f32 accumulator spill and headroom.
    budget = (2 * _vmem_block_bytes((1, Hp, Wp, Cin), jnp.bfloat16)
              + 2 * _vmem_block_bytes((K * K * Cin, Cout), jnp.bfloat16)
              + 4 * _vmem_block_bytes((1, Cout), jnp.float32)
              + 2 * _vmem_block_bytes((1, TH * W, Cout), jnp.bfloat16)
              + _vmem_block_bytes((TH * W, K * K * Cin), jnp.bfloat16)
              + _vmem_block_bytes((TH * W, Cout), jnp.float32)
              + (8 << 20))
    vmem_limit = int(min(max(budget, 32 << 20), 96 << 20))

    flops = 2 * N * H * W * K * K * Cin * Cout
    bytes_accessed = (N * Hp * Wp * Cin * 2        # padded input (bf16)
                      + K * K * Cin * Cout * 2     # weights (bf16)
                      + 2 * Cout * 4               # bias + alpha row
                      + N * H * W * Cout * 2)      # conv output (bf16)

    conv_flat = pl.pallas_call(
        kernel,
        out_shape=jax.ShapeDtypeStruct((N, H * W, Cout), jnp.bfloat16),
        grid_spec=grid_spec,
        compiler_params=pltpu.CompilerParams(
            dimension_semantics=("parallel", "parallel"),
            vmem_limit_bytes=vmem_limit),
        cost_estimate=pl.CostEstimate(flops=flops, transcendentals=0,
                                      bytes_accessed=bytes_accessed),
    )(x_pad, w2d, b2d, alpha_row)

    # PixelShuffle + NHWC->NCHW as ONE composed permutation over the bf16 intermediate
    # (the f32 convert fuses into the same pass):
    #   out[n, c, h*r+a, w*r+b] = conv[n, h*W + w, c*r*r + a*r + b]
    # TODO(synk): fuse this permutation into the kernel's output store (in-kernel lane
    # interleave of the r sub-pixel columns) to remove the last HBM round-trip.
    y = conv_flat.reshape(N, H, W, C, r, r)
    y = jnp.transpose(y, (0, 3, 1, 4, 2, 5)).astype(jnp.float32)   # (N, C, H, r, W, r)
    return y.reshape(N, C, H * r, W * r)


def reference_forward(x_nchw, w_hwio, bias, alpha, *, scaling_factor):
    """Pure-JAX f32 reference of the PyTorch forward (conv -> pixel_shuffle -> PReLU)."""
    N, Cin, H, W = x_nchw.shape
    r = scaling_factor
    Cout = w_hwio.shape[3]
    C = Cout // (r * r)
    x_nhwc = jnp.transpose(x_nchw, (0, 2, 3, 1))
    conv = lax.conv_general_dilated(
        x_nhwc.astype(jnp.float32), w_hwio.astype(jnp.float32),
        window_strides=(1, 1), padding="SAME",
        dimension_numbers=("NHWC", "HWIO", "NHWC"))
    conv = conv + bias.reshape(1, 1, 1, Cout)
    y = conv.reshape(N, H, W, C, r, r)
    y = jnp.transpose(y, (0, 1, 4, 2, 5, 3)).reshape(N, H * r, W * r, C)
    y = jnp.where(y > 0, y, jnp.asarray(alpha, jnp.float32).reshape(-1)[0] * y)
    return jnp.transpose(y, (0, 3, 1, 2))


if __name__ == "__main__":
    # Small, module-consistent shapes.
    N, n_channels, H, W = 2, 4, 16, 16
    kernel_size, scaling_factor = 3, 2
    Cout = n_channels * scaling_factor ** 2

    key = jax.random.PRNGKey(0)
    kx, kw, kb = jax.random.split(key, 3)
    x = jax.random.normal(kx, (N, n_channels, H, W), dtype=jnp.float32)
    # Conv2d weight (deterministic synthetic init), stored HWIO = (K, K, Cin, Cout).
    w = 0.1 * jax.random.normal(
        kw, (kernel_size, kernel_size, n_channels, Cout), dtype=jnp.float32)
    b = 0.1 * jax.random.normal(kb, (Cout,), dtype=jnp.float32)
    alpha = jnp.float32(0.25)   # nn.PReLU() default init

    out = subpixel_conv_block(x, w, b, alpha, scaling_factor=scaling_factor)
    out = jax.block_until_ready(out)

    ref = reference_forward(x, w, b, alpha, scaling_factor=scaling_factor)
    assert out.shape == (N, n_channels, H * scaling_factor, W * scaling_factor), out.shape
    # bf16 inputs / weights / conv intermediate on the MXU -> compare against the f32
    # reference with a bf16-appropriate tolerance.
    if not jnp.allclose(out, ref, atol=5e-2, rtol=5e-2):
        raise AssertionError("Pallas kernel output does not match reference")

    print("KERNEL_OK")
</pallas_src>

<mosaic_0001>
module attributes {stable_mosaic.version = 11 : i64} {
  func.func @subpixel_conv_kernel(%arg0: i32, %arg1: i32, %arg2: memref<1x18x18x4xbf16, #tpu.memory_space<vmem>>, %arg3: memref<36x16xbf16, #tpu.memory_space<vmem>>, %arg4: memref<1x16xf32, #tpu.memory_space<vmem>>, %arg5: memref<1x16xf32, #tpu.memory_space<vmem>>, %arg6: memref<1x128x16xbf16, #tpu.memory_space<vmem>>) attributes {dimension_semantics = [#tpu.dimension_semantics<parallel>, #tpu.dimension_semantics<parallel>], iteration_bounds = array<i64: 2, 2>, scalar_prefetch = 0 : i64, scratch_operands = 0 : i64, tpu.core_type = #tpu.core_type<tc>, window_params = [{transform_indices = @transform_0, window_bounds = array<i64: 1, 18, 18, 4>}, {pipeline_mode = #tpu.pipeline_mode<synchronous>, transform_indices = @transform_1, window_bounds = array<i64: 36, 16>}, {pipeline_mode = #tpu.pipeline_mode<synchronous>, transform_indices = @transform_2, window_bounds = array<i64: 1, 16>}, {pipeline_mode = #tpu.pipeline_mode<synchronous>, transform_indices = @transform_3, window_bounds = array<i64: 1, 16>}, {transform_indices = @transform_4, window_bounds = array<i64: 1, 128, 16>}]} {
    %c8_i32 = arith.constant 8 : i32
    %0 = arith.muli %arg1, %c8_i32 : i32
    %1 = tpu.assume_multiple %0, 8 : i32
    %c0_i32 = arith.constant 0 : i32
    %2 = arith.addi %1, %c0_i32 : i32
    %c0 = arith.constant 0 : index
    %3 = arith.index_cast %2 : i32 to index
    %c0_0 = arith.constant 0 : index
    %c0_1 = arith.constant 0 : index
    %4 = vector.load %arg2[%c0, %3, %c0_0, %c0_1] : memref<1x18x18x4xbf16, #tpu.memory_space<vmem>>, vector<1x8x18x4xbf16>
    %5 = vector.shape_cast %4 : vector<1x8x18x4xbf16> to vector<8x18x4xbf16>
    %6 = vector.extract_strided_slice %5 {offsets = [0, 0, 0], sizes = [8, 16, 4], strides = [1, 1, 1]} : vector<8x18x4xbf16> to vector<8x16x4xbf16>
    %7 = vector.shape_cast %6 : vector<8x16x4xbf16> to vector<128x4xbf16>
    %8 = vector.extract_strided_slice %5 {offsets = [0, 1, 0], sizes = [8, 16, 4], strides = [1, 1, 1]} : vector<8x18x4xbf16> to vector<8x16x4xbf16>
    %9 = vector.shape_cast %8 : vector<8x16x4xbf16> to vector<128x4xbf16>
    %10 = vector.extract_strided_slice %5 {offsets = [0, 2, 0], sizes = [8, 16, 4], strides = [1, 1, 1]} : vector<8x18x4xbf16> to vector<8x16x4xbf16>
    %11 = vector.shape_cast %10 : vector<8x16x4xbf16> to vector<128x4xbf16>
    %c1_i32 = arith.constant 1 : i32
    %12 = arith.addi %1, %c1_i32 : i32
    %c0_2 = arith.constant 0 : index
    %13 = arith.index_cast %12 : i32 to index
    %c0_3 = arith.constant 0 : index
    %c0_4 = arith.constant 0 : index
    %14 = vector.load %arg2[%c0_2, %13, %c0_3, %c0_4] : memref<1x18x18x4xbf16, #tpu.memory_space<vmem>>, vector<1x8x18x4xbf16>
    %15 = vector.shape_cast %14 : vector<1x8x18x4xbf16> to vector<8x18x4xbf16>
    %16 = vector.extract_strided_slice %15 {offsets = [0, 0, 0], sizes = [8, 16, 4], strides = [1, 1, 1]} : vector<8x18x4xbf16> to vector<8x16x4xbf16>
    %17 = vector.shape_cast %16 : vector<8x16x4xbf16> to vector<128x4xbf16>
    %18 = vector.extract_strided_slice %15 {offsets = [0, 1, 0], sizes = [8, 16, 4], strides = [1, 1, 1]} : vector<8x18x4xbf16> to vector<8x16x4xbf16>
    %19 = vector.shape_cast %18 : vector<8x16x4xbf16> to vector<128x4xbf16>
    %20 = vector.extract_strided_slice %15 {offsets = [0, 2, 0], sizes = [8, 16, 4], strides = [1, 1, 1]} : vector<8x18x4xbf16> to vector<8x16x4xbf16>
    %21 = vector.shape_cast %20 : vector<8x16x4xbf16> to vector<128x4xbf16>
    %c2_i32 = arith.constant 2 : i32
    %22 = arith.addi %1, %c2_i32 : i32
    %c0_5 = arith.constant 0 : index
    %23 = arith.index_cast %22 : i32 to index
    %c0_6 = arith.constant 0 : index
    %c0_7 = arith.constant 0 : index
    %24 = vector.load %arg2[%c0_5, %23, %c0_6, %c0_7] : memref<1x18x18x4xbf16, #tpu.memory_space<vmem>>, vector<1x8x18x4xbf16>
    %25 = vector.shape_cast %24 : vector<1x8x18x4xbf16> to vector<8x18x4xbf16>
    %26 = vector.extract_strided_slice %25 {offsets = [0, 0, 0], sizes = [8, 16, 4], strides = [1, 1, 1]} : vector<8x18x4xbf16> to vector<8x16x4xbf16>
    %27 = vector.shape_cast %26 : vector<8x16x4xbf16> to vector<128x4xbf16>
    %28 = vector.extract_strided_slice %25 {offsets = [0, 1, 0], sizes = [8, 16, 4], strides = [1, 1, 1]} : vector<8x18x4xbf16> to vector<8x16x4xbf16>
    %29 = vector.shape_cast %28 : vector<8x16x4xbf16> to vector<128x4xbf16>
    %30 = vector.extract_strided_slice %25 {offsets = [0, 2, 0], sizes = [8, 16, 4], strides = [1, 1, 1]} : vector<8x18x4xbf16> to vector<8x16x4xbf16>
    %31 = vector.shape_cast %30 : vector<8x16x4xbf16> to vector<128x4xbf16>
    %32 = tpu.concatenate %7, %9, %11, %17, %19, %21, %27, %29, %31 in 1 : vector<128x4xbf16>, vector<128x4xbf16>, vector<128x4xbf16>, vector<128x4xbf16>, vector<128x4xbf16>, vector<128x4xbf16>, vector<128x4xbf16>, vector<128x4xbf16>, vector<128x4xbf16> -> vector<128x36xbf16>
    %c0_8 = arith.constant 0 : index
    %c0_9 = arith.constant 0 : index
    %33 = vector.load %arg3[%c0_8, %c0_9] : memref<36x16xbf16, #tpu.memory_space<vmem>>, vector<36x16xbf16>
    %cst = arith.constant dense<0.000000e+00> : vector<128x16xf32>
    %34 = tpu.matmul %32, %33, %cst {dimension_numbers = #tpu.dot_dimension_numbers<[1], [0], [0], [1], [0, 0, 1, 1], [], []>} : vector<128x36xbf16>, vector<36x16xbf16>, vector<128x16xf32> -> vector<128x16xf32>
    %c0_10 = arith.constant 0 : index
    %c0_11 = arith.constant 0 : index
    %35 = vector.load %arg4[%c0_10, %c0_11] : memref<1x16xf32, #tpu.memory_space<vmem>>, vector<1x16xf32>
    %36 = vector.broadcast %35 : vector<1x16xf32> to vector<128x16xf32>
    %37 = arith.addf %34, %36 : vector<128x16xf32>
    %cst_12 = arith.constant 0.000000e+00 : f32
    %38 = vector.broadcast %cst_12 : f32 to vector<128x16xf32>
    %39 = arith.cmpf ogt, %37, %38 : vector<128x16xf32>
    %c0_13 = arith.constant 0 : index
    %c0_14 = arith.constant 0 : index
    %40 = vector.load %arg5[%c0_13, %c0_14] : memref<1x16xf32, #tpu.memory_space<vmem>>, vector<1x16xf32>
    %41 = vector.broadcast %40 : vector<1x16xf32> to vector<128x16xf32>
    %42 = arith.mulf %41, %37 : vector<128x16xf32>
    %43 = arith.select %39, %37, %42 : vector<128x16xi1>, vector<128x16xf32>
    %44 = vector.shape_cast %43 : vector<128x16xf32> to vector<1x128x16xf32>
    %45 = arith.truncf %44 : vector<1x128x16xf32> to vector<1x128x16xbf16>
    %c0_15 = arith.constant 0 : index
    %c0_16 = arith.constant 0 : index
    %c0_17 = arith.constant 0 : index
    %46 = vector.load %arg6[%c0_15, %c0_16, %c0_17] : memref<1x128x16xbf16, #tpu.memory_space<vmem>>, vector<1x128x16xbf16>
    tpu.vector_store %arg6[%c0_15, %c0_16, %c0_17], %45 {strides = array<i32>} : memref<1x128x16xbf16, #tpu.memory_space<vmem>>, vector<1x128x16xbf16>,
    return
  }
  func.func @transform_0(%arg0: i32, %arg1: i32) -> (i32, i32, i32, i32) {
    %c0_i32 = arith.constant 0 : i32
    %c0_i32_0 = arith.constant 0 : i32
    %c0_i32_1 = arith.constant 0 : i32
    %c0_i32_2 = arith.constant 0 : i32
    return %arg0, %c0_i32, %c0_i32_0, %c0_i32_1 : i32, i32, i32, i32
  }
  func.func @transform_1(%arg0: i32, %arg1: i32) -> (i32, i32) {
    %c0_i32 = arith.constant 0 : i32
    %c0_i32_0 = arith.constant 0 : i32
    %c0_i32_1 = arith.constant 0 : i32
    return %c0_i32, %c0_i32_0 : i32, i32
  }
  func.func @transform_2(%arg0: i32, %arg1: i32) -> (i32, i32) {
    %c0_i32 = arith.constant 0 : i32
    %c0_i32_0 = arith.constant 0 : i32
    %c0_i32_1 = arith.constant 0 : i32
    return %c0_i32, %c0_i32_0 : i32, i32
  }
  func.func @transform_3(%arg0: i32, %arg1: i32) -> (i32, i32) {
    %c0_i32 = arith.constant 0 : i32
    %c0_i32_0 = arith.constant 0 : i32
    %c0_i32_1 = arith.constant 0 : i32
    return %c0_i32, %c0_i32_0 : i32, i32
  }
  func.func @transform_4(%arg0: i32, %arg1: i32) -> (i32, i32, i32) {
    %c0_i32 = arith.constant 0 : i32
    %c0_i32_0 = arith.constant 0 : i32
    return %arg0, %arg1, %c0_i32 : i32, i32, i32
  }
}

</mosaic_0001>

<llo_original>
// kernel: tpu_custom_call.1
$region0: #{tpu_custom_call.1}
  #allocation0 [shape = 'u32[]', space=smem, size = 0x4, offset = 0x4, fixed_abs, tag = 'smem constant byte address 0x4 - core index']
  #allocation1 [shape = 'u32[144,128]{1,0:T(1,128)}', space=vmem, size = 0x12000, scoped, tag = 'internal scratch']
  %s0 = inlined_call_operand.vmem [shape: bf16[2,18,18,4], index: 0, kind: input, shape index: {}]
  %s1 = inlined_call_operand.vmem [shape: bf16[36,16], index: 1, kind: input, shape index: {}]
  %s2 = inlined_call_operand.vmem [shape: f32[1,16], index: 2, kind: input, shape index: {}]
  %s3 = inlined_call_operand.vmem [shape: f32[1,16], index: 3, kind: input, shape index: {}]
  %s4 = inlined_call_operand.vmem [shape: bf16[2,256,16], index: 4, kind: output, shape index: {}]
  %s5 = sld [smem:[#allocation0]]
  $region49: #{tpu_custom_call.1} parent=0
    _
  %s7 = ssub.s32 1, %s5
  %s8 = scalar_select 0, %s7, %s5
  loop: start=0, step=1, limit=6
  $region2: #{tpu_custom_call.1} parent=0 // loop_pre_header
    _
  $region3: #{tpu_custom_call.1} parent=0 // loop_header
    %s10 = sphi 0, %s14
    %p11 = scmp.ge.s32.totalorder %s10, 6
    %s17 = sphi 0, %s29
    %s18 = sphi 0, %s25
    %s19 = sphi 0, %s17
    %s20 = sphi 0, %s18
    %s21 = sphi 0, %s19
    %s22 = sphi 0, %s20
    %s32 = sphi 0, %s34
    %s35 = sphi 0, %s32
    %s36 = sphi 0, %s35
    %s52 = sphi 0, %s36
    %s56 = sphi 0, %s56
    %s58 = sphi 0, %s56
    %s59 = sphi 0, %s58
    %s73 = sphi 0, %s59
    %s77 = sphi 0, %s77
    %s79 = sphi 0, %s77
    %s80 = sphi 0, %s79
    %s94 = sphi 0, %s80
    %s98 = sphi 0, %s98
    %s100 = sphi 0, %s98
    %s101 = sphi 0, %s100
    %s115 = sphi 0, %s101
    %s123 = sphi 0, %s125
    %s126 = sphi 0, %s123
    %s127 = sphi 0, %s126
    %s143 = sphi 0, %s127
  $region4: #{tpu_custom_call.1} parent=0 // loop_header_branch
    %13 = sbr.rel (%p11) target = $region8
  $region5: #{tpu_custom_call.1} parent=0 // loop_body
    %s15 = ssub.s32 %s10, 1
    %s16 = ssub.s32 %s10, 2
    %s23 = sadd.s32 1, %s18
    %p24 = scmp.ge.s32.totalorder %s23, 2
    %s25 = scalar_select %p24, 0, %s23
    %s26 = sadd.s32 1, %s17
    %s27 = scalar_select %p24, %s26, %s17
    %p28 = scmp.ge.s32.totalorder %s27, 2
    %s29 = scalar_select %p28, 0, %s27
    %s30 = ssub.s32 %s17, %s29
    %p31 = scmp.eq.s32.totalorder %s30, 0
    %s33 = sadd.s32 %s32, 1
    %s34 = scalar_select %p31, %s32, %s33
    %p37 = pneg %p31
    %p38 = scmp.eq.s32.totalorder %s10, 3
    %p39 = por %p37, %p38
    %p40 = scmp.ne.s32.totalorder %s32, %s35
    %p41 = scmp.eq.s32.totalorder %s10, 0
    %p42 = por %p40, %p41
    %p43 = scmp.ne.s32.totalorder %s32, %s35
    %p44 = scmp.eq.s32.totalorder %s15, 3
    %p45 = por %p43, %p44
    %p46 = scmp.ne.s32.totalorder %s35, %s36
    %p47 = scmp.eq.s32.totalorder %s15, 0
    %p48 = por %p46, %p47
    %p49 = scmp.ne.s32.totalorder %s35, %s36
    %p50 = scmp.eq.s32.totalorder %s16, 3
    %p51 = por %p49, %p50
    %p53 = scmp.ne.s32.totalorder %s36, %s52
    %p54 = scmp.eq.s32.totalorder %s16, 0
    %p55 = por %p53, %p54
    %s57 = sadd.s32 %s56, 1
    %p60 = scmp.eq.s32.totalorder %s10, 3
    %p61 = scmp.ne.s32.totalorder %s56, %s58
    %p62 = scmp.eq.s32.totalorder %s10, 0
    %p63 = por %p61, %p62
    %p64 = scmp.ne.s32.totalorder %s56, %s58
    %p65 = scmp.eq.s32.totalorder %s15, 3
    %p66 = por %p64, %p65
    %p67 = scmp.ne.s32.totalorder %s58, %s59
    %p68 = scmp.eq.s32.totalorder %s15, 0
    %p69 = por %p67, %p68
    %p70 = scmp.ne.s32.totalorder %s58, %s59
    %p71 = scmp.eq.s32.totalorder %s16, 3
    %p72 = por %p70, %p71
    %p74 = scmp.ne.s32.totalorder %s59, %s73
    %p75 = scmp.eq.s32.totalorder %s16, 0
    %p76 = por %p74, %p75
    %s78 = sadd.s32 %s77, 1
    %p81 = scmp.eq.s32.totalorder %s10, 3
    %p82 = scmp.ne.s32.totalorder %s77, %s79
    %p83 = scmp.eq.s32.totalorder %s10, 0
    %p84 = por %p82, %p83
    %p85 = scmp.ne.s32.totalorder %s77, %s79
    %p86 = scmp.eq.s32.totalorder %s15, 3
    %p87 = por %p85, %p86
    %p88 = scmp.ne.s32.totalorder %s79, %s80
    %p89 = scmp.eq.s32.totalorder %s15, 0
    %p90 = por %p88, %p89
    %p91 = scmp.ne.s32.totalorder %s79, %s80
    %p92 = scmp.eq.s32.totalorder %s16, 3
    %p93 = por %p91, %p92
    %p95 = scmp.ne.s32.totalorder %s80, %s94
    %p96 = scmp.eq.s32.totalorder %s16, 0
    %p97 = por %p95, %p96
    %s99 = sadd.s32 %s98, 1
    %p102 = scmp.eq.s32.totalorder %s10, 3
    %p103 = scmp.ne.s32.totalorder %s98, %s100
    %p104 = scmp.eq.s32.totalorder %s10, 0
    %p105 = por %p103, %p104
    %p106 = scmp.ne.s32.totalorder %s98, %s100
    %p107 = scmp.eq.s32.totalorder %s15, 3
    %p108 = por %p106, %p107
    %p109 = scmp.ne.s32.totalorder %s100, %s101
    %p110 = scmp.eq.s32.totalorder %s15, 0
    %p111 = por %p109, %p110
    %p112 = scmp.ne.s32.totalorder %s100, %s101
    %p113 = scmp.eq.s32.totalorder %s16, 3
    %p114 = por %p112, %p113
    %p116 = scmp.ne.s32.totalorder %s101, %s115
    %p117 = scmp.eq.s32.totalorder %s16, 0
    %p118 = por %p116, %p117
    %s119 = ssub.s32 %s17, %s29
    %s120 = ssub.s32 %s18, %s25
    %s121 = sor.u32 %s119, %s120
    %p122 = scmp.eq.s32.totalorder %s121, 0
    %s124 = sadd.s32 %s123, 1
    %s125 = scalar_select %p122, %s123, %s124
    %p128 = pneg %p122
    %p129 = scmp.eq.s32.totalorder %s10, 3
    %p130 = por %p128, %p129
    %p131 = scmp.ne.s32.totalorder %s123, %s126
    %p132 = scmp.eq.s32.totalorder %s10, 0
    %p133 = por %p131, %p132
    %p134 = scmp.ne.s32.totalorder %s123, %s126
    %p135 = scmp.eq.s32.totalorder %s15, 3
    %p136 = por %p134, %p135
    %p137 = scmp.ne.s32.totalorder %s126, %s127
    %p138 = scmp.eq.s32.totalorder %s15, 0
    %p139 = por %p137, %p138
    %p140 = scmp.ne.s32.totalorder %s126, %s127
    %p141 = scmp.eq.s32.totalorder %s16, 3
    %p142 = por %p140, %p141
    %p144 = scmp.ne.s32.totalorder %s127, %s143
    %p145 = scmp.eq.s32.totalorder %s16, 0
    %p146 = por %p144, %p145
    %p147 = scmp.le.s32.totalorder 1, %s10
    %p148 = scmp.lt.s32.totalorder %s10, 5
    %p149 = pnand %p147, %p148
    %p150 = pneg %p149
    // Predicated region
    $region9: #{tpu_custom_call.1} parent=5 // pred_check
      _
    $region10: #{tpu_custom_call.1} parent=5 // pred_check_branch
      %152 = sbr.rel (%p149) target = $region12
    $region11: #{tpu_custom_call.1} parent=5 // pred_region
      %s153 = ssub.s32 %s10, 1
      // Predicated region
      $region13: #{tpu_custom_call.1} parent=11 // pred_check
        %p154 = pneg %p69
      $region14: #{tpu_custom_call.1} parent=11 // pred_check_branch
        %156 = sbr.rel (%p154) target = $region16
      $region15: #{tpu_custom_call.1} parent=11 // pred_region
        _
      $region16: #{tpu_custom_call.1} parent=11 // pred_fallthru
        _
      // Predicated region
      $region17: #{tpu_custom_call.1} parent=11 // pred_check
        %p157 = pneg %p90
      $region18: #{tpu_custom_call.1} parent=11 // pred_check_branch
        %159 = sbr.rel (%p157) target = $region20
      $region19: #{tpu_custom_call.1} parent=11 // pred_region
        _
      $region20: #{tpu_custom_call.1} parent=11 // pred_fallthru
        _
      // Predicated region
      $region21: #{tpu_custom_call.1} parent=11 // pred_check
        %p160 = pneg %p111
      $region22: #{tpu_custom_call.1} parent=11 // pred_check_branch
        %162 = sbr.rel (%p160) target = $region24
      $region23: #{tpu_custom_call.1} parent=11 // pred_region
        _
      $region24: #{tpu_custom_call.1} parent=11 // pred_fallthru
        _
    $region12: #{tpu_custom_call.1} parent=5 // pred_fallthru
      _
    %p163 = scmp.lt.s32.totalorder %s10, 4
    // Predicated region
    $region25: #{tpu_custom_call.1} parent=5 // pred_check
      %p164 = pneg %p163
    $region26: #{tpu_custom_call.1} parent=5 // pred_check_branch
      %166 = sbr.rel (%p164) target = $region28
    $region27: #{tpu_custom_call.1} parent=5 // pred_region
      // Predicated region
      $region29: #{tpu_custom_call.1} parent=27 // pred_check
        %p167 = pneg %p42
      $region30: #{tpu_custom_call.1} parent=27 // pred_check_branch
        %169 = sbr.rel (%p167) target = $region32
      $region31: #{tpu_custom_call.1} parent=27 // pred_region
        %p170 = scmp.lt.s32.totalorder %s17, 1
        %s171 = scalar_select %p170, %s17, 1
        %s172 = smul.addr %s171, 54
        %s173 = smul.addr %s172, 4
        %s174 = scalar_lea.vmem %s0, %s173
      $region32: #{tpu_custom_call.1} parent=27 // pred_fallthru
        _
    $region28: #{tpu_custom_call.1} parent=5 // pred_fallthru
      _
    %p175 = scmp.le.s32.totalorder 1, %s10
    %p176 = scmp.lt.s32.totalorder %s10, 5
    %p177 = pnand %p175, %p176
    %p178 = pneg %p177
    // Predicated region
    $region33: #{tpu_custom_call.1} parent=5 // pred_check
      _
    $region34: #{tpu_custom_call.1} parent=5 // pred_check_branch
      %180 = sbr.rel (%p177) target = $region36
    $region35: #{tpu_custom_call.1} parent=5 // pred_region
      %s181 = ssub.s32 %s10, 1
      %p182 = scmp.lt.s32.totalorder %s19, 1
      %s183 = scalar_select %p182, %s19, 1
      %s184 = smul.addr %s183, 54
      %s185 = smul.addr %s184, 4
      %s186 = scalar_lea.vmem %s0, %s185
      %p187 = pneg %p48
      %p188 = pneg %p45
      %p189 = pneg %p69
      %p190 = pneg %p66
      %p191 = pneg %p90
      %p192 = pneg %p87
      %p193 = pneg %p111
      %p194 = pneg %p108
      %p195 = pneg %p139
      %p196 = pneg %p136
      %s197 = smul.u32 16, %s20
      %p198 = scmp.lt.s32.totalorder %s19, 1
      %s199 = scalar_select %p198, %s19, 1
      %p200 = scmp.lt.s32.totalorder %s197, 31
      %s201 = scalar_select %p200, %s197, 31
      %s202 = smul.addr %s199, 32
      %s203 = sadd.s32 %s201, %s202
      %s204 = smul.addr %s203, 4
      %s205 = scalar_lea.vmem %s4, %s204
      %p206 = scmp.lt.s32.totalorder %s19, 1
      %s207 = scalar_select %p206, %s19, 1
      %s208 = smul.addr %s207, 54
      %s209 = smul.addr %s208, 4
      %s210 = scalar_lea.vmem %s0, %s209
      %s211 = smul.u32 16, %s20
      %p212 = scmp.lt.s32.totalorder %s19, 1
      %s213 = scalar_select %p212, %s19, 1
      %p214 = scmp.lt.s32.totalorder %s211, 31
      %s215 = scalar_select %p214, %s211, 31
      %s216 = smul.addr %s213, 32
      %s217 = sadd.s32 %s215, %s216
      %s218 = smul.addr %s217, 4
      %s219 = scalar_lea.vmem %s4, %s218
      %s220 = smul.u32 16, %s20
      %s222 = smul.u32 %s20, 8
      %s223 = smul.u32 %s222, 3
      %s224 = smul.addr %s223, 4
      %s225 = scalar_lea.vmem %s210, %s224
      %v226 = vld [vmem:[%s225] sm:$0xf]
      %v227 = vld [vmem:[%s225 + $0x4] sm:$0xf]
      %v228 = vld [vmem:[%s225 + $0x8] sm:$0x1]
      %v229 = vld [vmem:[%s225 + $0xc] sm:$0xf]
      %v230 = vld [vmem:[%s225 + $0x10] sm:$0xf]
      %v231 = vld [vmem:[%s225 + $0x14] sm:$0x1]
      %v232 = vld [vmem:[%s225 + $0x18] sm:$0xf]
      %v233 = vld [vmem:[%s225 + $0x1c] sm:$0xf]
      %v234 = vld [vmem:[%s225 + $0x20] sm:$0x1]
      %v235 = vld [vmem:[%s225 + $0x24] sm:$0xf]
      %v236 = vld [vmem:[%s225 + $0x28] sm:$0xf]
      %v237 = vld [vmem:[%s225 + $0x2c] sm:$0x1]
      %v238 = vld [vmem:[%s225 + $0x30] sm:$0xf]
      %v239 = vld [vmem:[%s225 + $0x34] sm:$0xf]
      %v240 = vld [vmem:[%s225 + $0x38] sm:$0x1]
      %v241 = vld [vmem:[%s225 + $0x3c] sm:$0xf]
      %v242 = vld [vmem:[%s225 + $0x40] sm:$0xf]
      %v243 = vld [vmem:[%s225 + $0x44] sm:$0x1]
      %v244 = vld [vmem:[%s225 + $0x48] sm:$0xf]
      %v245 = vld [vmem:[%s225 + $0x4c] sm:$0xf]
      %v246 = vld [vmem:[%s225 + $0x50] sm:$0x1]
      %v247 = vld [vmem:[%s225 + $0x54] sm:$0xf]
      %v248 = vld [vmem:[%s225 + $0x58] sm:$0xf]
      %v249 = vld [vmem:[%s225 + $0x5c] sm:$0x1]
      %vm250 = vsmask.f32 3328
      %vm251 = vsmask.f32 7440
      %vm252 = vmor %vm250, %vm251
      %v254 = vshrl.u32 %v226, 16
      %v256 = vrot.slane %v254, 4
      %v257 = vshll.u32 %v226, 16
      %v259 = vrot.slane %v257, 5
      %v260 = vor.u32 %v256, %v259
      %v261 = vrot.slane %v260, 4
      %v263 = vshll.u32 %v227, 16
      %v265 = vrot.slane %v263, 5
      %v266 = vsel %vm252, %v261, %v265
      %v267 = vshrl.u32 %v227, 16
      %v269 = vrot.slane %v267, 4
      %v270 = vor.u32 %v269, %v265
      %v271 = vrot.slane %v270, 4
      %v273 = vshll.u32 %v228, 16
      %v275 = vrot.slane %v273, 5
      %v276 = vsel %vm252, %v271, %v275
      %v278 = vshrl.u32 %v229, 16
      %v280 = vrot.slane %v278, 4
      %v281 = vshll.u32 %v229, 16
      %v283 = vrot.slane %v281, 5
      %v284 = vor.u32 %v280, %v283
      %v285 = vrot.slane %v284, 4
      %v287 = vshll.u32 %v230, 16
      %v289 = vrot.slane %v287, 5
      %v290 = vsel %vm252, %v285, %v289
      %v291 = vshrl.u32 %v230, 16
      %v293 = vrot.slane %v291, 4
      %v294 = vor.u32 %v293, %v289
      %v295 = vrot.slane %v294, 4
      %v297 = vshll.u32 %v231, 16
      %v299 = vrot.slane %v297, 5
      %v300 = vsel %vm252, %v295, %v299
      %v302 = vshrl.u32 %v232, 16
      %v304 = vrot.slane %v302, 4
      %v305 = vshll.u32 %v232, 16
      %v307 = vrot.slane %v305, 5
      %v308 = vor.u32 %v304, %v307
      %v309 = vrot.slane %v308, 4
      %v311 = vshll.u32 %v233, 16
      %v313 = vrot.slane %v311, 5
      %v314 = vsel %vm252, %v309, %v313
      %v315 = vshrl.u32 %v233, 16
      %v317 = vrot.slane %v315, 4
      %v318 = vor.u32 %v317, %v313
      %v319 = vrot.slane %v318, 4
      %v321 = vshll.u32 %v234, 16
      %v323 = vrot.slane %v321, 5
      %v324 = vsel %vm252, %v319, %v323
      %v326 = vshrl.u32 %v235, 16
      %v328 = vrot.slane %v326, 4
      %v329 = vshll.u32 %v235, 16
      %v331 = vrot.slane %v329, 5
      %v332 = vor.u32 %v328, %v331
      %v333 = vrot.slane %v332, 4
      %v335 = vshll.u32 %v236, 16
      %v337 = vrot.slane %v335, 5
      %v338 = vsel %vm252, %v333, %v337
      %v339 = vshrl.u32 %v236, 16
      %v341 = vrot.slane %v339, 4
      %v342 = vor.u32 %v341, %v337
      %v343 = vrot.slane %v342, 4
      %v345 = vshll.u32 %v237, 16
      %v347 = vrot.slane %v345, 5
      %v348 = vsel %vm252, %v343, %v347
      %v350 = vshrl.u32 %v238, 16
      %v352 = vrot.slane %v350, 4
      %v353 = vshll.u32 %v238, 16
      %v355 = vrot.slane %v353, 5
      %v356 = vor.u32 %v352, %v355
      %v357 = vrot.slane %v356, 4
      %v359 = vshll.u32 %v239, 16
      %v361 = vrot.slane %v359, 5
      %v362 = vsel %vm252, %v357, %v361
      %v363 = vshrl.u32 %v239, 16
      %v365 = vrot.slane %v363, 4
      %v366 = vor.u32 %v365, %v361
      %v367 = vrot.slane %v366, 4
      %v369 = vshll.u32 %v240, 16
      %v371 = vrot.slane %v369, 5
      %v372 = vsel %vm252, %v367, %v371
      %v374 = vshrl.u32 %v241, 16
      %v376 = vrot.slane %v374, 4
      %v377 = vshll.u32 %v241, 16
      %v379 = vrot.slane %v377, 5
      %v380 = vor.u32 %v376, %v379
      %v381 = vrot.slane %v380, 4
      %v383 = vshll.u32 %v242, 16
      %v385 = vrot.slane %v383, 5
      %v386 = vsel %vm252, %v381, %v385
      %v387 = vshrl.u32 %v242, 16
      %v389 = vrot.slane %v387, 4
      %v390 = vor.u32 %v389, %v385
      %v391 = vrot.slane %v390, 4
      %v393 = vshll.u32 %v243, 16
      %v395 = vrot.slane %v393, 5
      %v396 = vsel %vm252, %v391, %v395
      %v398 = vshrl.u32 %v244, 16
      %v400 = vrot.slane %v398, 4
      %v401 = vshll.u32 %v244, 16
      %v403 = vrot.slane %v401, 5
      %v404 = vor.u32 %v400, %v403
      %v405 = vrot.slane %v404, 4
      %v407 = vshll.u32 %v245, 16
      %v409 = vrot.slane %v407, 5
      %v410 = vsel %vm252, %v405, %v409
      %v411 = vshrl.u32 %v245, 16
      %v413 = vrot.slane %v411, 4
      %v414 = vor.u32 %v413, %v409
      %v415 = vrot.slane %v414, 4
      %v417 = vshll.u32 %v246, 16
      %v419 = vrot.slane %v417, 5
      %v420 = vsel %vm252, %v415, %v419
      %v422 = vshrl.u32 %v247, 16
      %v424 = vrot.slane %v422, 4
      %v425 = vshll.u32 %v247, 16
      %v427 = vrot.slane %v425, 5
      %v428 = vor.u32 %v424, %v427
      %v429 = vrot.slane %v428, 4
      %v431 = vshll.u32 %v248, 16
      %v433 = vrot.slane %v431, 5
      %v434 = vsel %vm252, %v429, %v433
      %v435 = vshrl.u32 %v248, 16
      %v437 = vrot.slane %v435, 4
      %v438 = vor.u32 %v437, %v433
      %v439 = vrot.slane %v438, 4
      %v441 = vshll.u32 %v249, 16
      %v443 = vrot.slane %v441, 5
      %v444 = vsel %vm252, %v439, %v443
      %vm469 = vcmask 1042432
      %vm470 = vcmask 1046532
      %vm471 = vmor %vm469, %vm470
      %v472 = vrot.slane %v226, 5
      %v473 = vrot.slane %v472, 4
      %v474 = vrot.slane %v227, 5
      %v475 = vsel %vm471, %v473, %v474
      %v476 = vrot.slane %v474, 4
      %v477 = vrot.slane %v228, 5
      %v478 = vsel %vm471, %v476, %v477
      %v479 = vrot.slane %v229, 5
      %v480 = vrot.slane %v479, 4
      %v481 = vrot.slane %v230, 5
      %v482 = vsel %vm471, %v480, %v481
      %v483 = vrot.slane %v481, 4
      %v484 = vrot.slane %v231, 5
      %v485 = vsel %vm471, %v483, %v484
      %v486 = vrot.slane %v232, 5
      %v487 = vrot.slane %v486, 4
      %v488 = vrot.slane %v233, 5
      %v489 = vsel %vm471, %v487, %v488
      %v490 = vrot.slane %v488, 4
      %v491 = vrot.slane %v234, 5
      %v492 = vsel %vm471, %v490, %v491
      %v493 = vrot.slane %v235, 5
      %v494 = vrot.slane %v493, 4
      %v495 = vrot.slane %v236, 5
      %v496 = vsel %vm471, %v494, %v495
      %v497 = vrot.slane %v495, 4
      %v498 = vrot.slane %v237, 5
      %v499 = vsel %vm471, %v497, %v498
      %v500 = vrot.slane %v238, 5
      %v501 = vrot.slane %v500, 4
      %v502 = vrot.slane %v239, 5
      %v503 = vsel %vm471, %v501, %v502
      %v504 = vrot.slane %v502, 4
      %v505 = vrot.slane %v240, 5
      %v506 = vsel %vm471, %v504, %v505
      %v507 = vrot.slane %v241, 5
      %v508 = vrot.slane %v507, 4
      %v509 = vrot.slane %v242, 5
      %v510 = vsel %vm471, %v508, %v509
      %v511 = vrot.slane %v509, 4
      %v512 = vrot.slane %v243, 5
      %v513 = vsel %vm471, %v511, %v512
      %v514 = vrot.slane %v244, 5
      %v515 = vrot.slane %v514, 4
      %v516 = vrot.slane %v245, 5
      %v517 = vsel %vm471, %v515, %v516
      %v518 = vrot.slane %v516, 4
      %v519 = vrot.slane %v246, 5
      %v520 = vsel %vm471, %v518, %v519
      %v521 = vrot.slane %v247, 5
      %v522 = vrot.slane %v521, 4
      %v523 = vrot.slane %v248, 5
      %v524 = vsel %vm471, %v522, %v523
      %v525 = vrot.slane %v523, 4
      %v526 = vrot.slane %v249, 5
      %v527 = vsel %vm471, %v525, %v526
      %s528 = sadd.s32 %s222, 1
      %s529 = smul.u32 %s528, 3
      %s530 = smul.addr %s529, 4
      %s531 = scalar_lea.vmem %s210, %s530
      %v532 = vld [vmem:[%s531] sm:$0xf]
      %v533 = vld [vmem:[%s531 + $0x4] sm:$0xf]
      %v534 = vld [vmem:[%s531 + $0x8] sm:$0x1]
      %v535 = vld [vmem:[%s531 + $0xc] sm:$0xf]
      %v536 = vld [vmem:[%s531 + $0x10] sm:$0xf]
      %v537 = vld [vmem:[%s531 + $0x14] sm:$0x1]
      %v538 = vld [vmem:[%s531 + $0x18] sm:$0xf]
      %v539 = vld [vmem:[%s531 + $0x1c] sm:$0xf]
      %v540 = vld [vmem:[%s531 + $0x20] sm:$0x1]
      %v541 = vld [vmem:[%s531 + $0x24] sm:$0xf]
      %v542 = vld [vmem:[%s531 + $0x28] sm:$0xf]
      %v543 = vld [vmem:[%s531 + $0x2c] sm:$0x1]
      %v544 = vld [vmem:[%s531 + $0x30] sm:$0xf]
      %v545 = vld [vmem:[%s531 + $0x34] sm:$0xf]
      %v546 = vld [vmem:[%s531 + $0x38] sm:$0x1]
      %v547 = vld [vmem:[%s531 + $0x3c] sm:$0xf]
      %v548 = vld [vmem:[%s531 + $0x40] sm:$0xf]
      %v549 = vld [vmem:[%s531 + $0x44] sm:$0x1]
      %v550 = vld [vmem:[%s531 + $0x48] sm:$0xf]
      %v551 = vld [vmem:[%s531 + $0x4c] sm:$0xf]
      %v552 = vld [vmem:[%s531 + $0x50] sm:$0x1]
      %v553 = vld [vmem:[%s531 + $0x54] sm:$0xf]
      %v554 = vld [vmem:[%s531 + $0x58] sm:$0xf]
      %v555 = vld [vmem:[%s531 + $0x5c] sm:$0x1]
      %v557 = vshrl.u32 %v532, 16
      %v559 = vrot.slane %v557, 4
      %v560 = vshll.u32 %v532, 16
      %v562 = vrot.slane %v560, 5
      %v563 = vor.u32 %v559, %v562
      %v564 = vrot.slane %v563, 4
      %v566 = vshll.u32 %v533, 16
      %v568 = vrot.slane %v566, 5
      %v569 = vsel %vm252, %v564, %v568
      %v570 = vshrl.u32 %v533, 16
      %v572 = vrot.slane %v570, 4
      %v573 = vor.u32 %v572, %v568
      %v574 = vrot.slane %v573, 4
      %v576 = vshll.u32 %v534, 16
      %v578 = vrot.slane %v576, 5
      %v579 = vsel %vm252, %v574, %v578
      %v581 = vshrl.u32 %v535, 16
      %v583 = vrot.slane %v581, 4
      %v584 = vshll.u32 %v535, 16
      %v586 = vrot.slane %v584, 5
      %v587 = vor.u32 %v583, %v586
      %v588 = vrot.slane %v587, 4
      %v590 = vshll.u32 %v536, 16
      %v592 = vrot.slane %v590, 5
      %v593 = vsel %vm252, %v588, %v592
      %v594 = vshrl.u32 %v536, 16
      %v596 = vrot.slane %v594, 4
      %v597 = vor.u32 %v596, %v592
      %v598 = vrot.slane %v597, 4
      %v600 = vshll.u32 %v537, 16
      %v602 = vrot.slane %v600, 5
      %v603 = vsel %vm252, %v598, %v602
      %v605 = vshrl.u32 %v538, 16
      %v607 = vrot.slane %v605, 4
      %v608 = vshll.u32 %v538, 16
      %v610 = vrot.slane %v608, 5
      %v611 = vor.u32 %v607, %v610
      %v612 = vrot.slane %v611, 4
      %v614 = vshll.u32 %v539, 16
      %v616 = vrot.slane %v614, 5
      %v617 = vsel %vm252, %v612, %v616
      %v618 = vshrl.u32 %v539, 16
      %v620 = vrot.slane %v618, 4
      %v621 = vor.u32 %v620, %v616
      %v622 = vrot.slane %v621, 4
      %v624 = vshll.u32 %v540, 16
      %v626 = vrot.slane %v624, 5
      %v627 = vsel %vm252, %v622, %v626
      %v629 = vshrl.u32 %v541, 16
      %v631 = vrot.slane %v629, 4
      %v632 = vshll.u32 %v541, 16
      %v634 = vrot.slane %v632, 5
      %v635 = vor.u32 %v631, %v634
      %v636 = vrot.slane %v635, 4
      %v638 = vshll.u32 %v542, 16
      %v640 = vrot.slane %v638, 5
      %v641 = vsel %vm252, %v636, %v640
      %v642 = vshrl.u32 %v542, 16
      %v644 = vrot.slane %v642, 4
      %v645 = vor.u32 %v644, %v640
      %v646 = vrot.slane %v645, 4
      %v648 = vshll.u32 %v543, 16
      %v650 = vrot.slane %v648, 5
      %v651 = vsel %vm252, %v646, %v650
      %v653 = vshrl.u32 %v544, 16
      %v655 = vrot.slane %v653, 4
      %v656 = vshll.u32 %v544, 16
      %v658 = vrot.slane %v656, 5
      %v659 = vor.u32 %v655, %v658
      %v660 = vrot.slane %v659, 4
      %v662 = vshll.u32 %v545, 16
      %v664 = vrot.slane %v662, 5
      %v665 = vsel %vm252, %v660, %v664
      %v666 = vshrl.u32 %v545, 16
      %v668 = vrot.slane %v666, 4
      %v669 = vor.u32 %v668, %v664
      %v670 = vrot.slane %v669, 4
      %v672 = vshll.u32 %v546, 16
      %v674 = vrot.slane %v672, 5
      %v675 = vsel %vm252, %v670, %v674
      %v677 = vshrl.u32 %v547, 16
      %v679 = vrot.slane %v677, 4
      %v680 = vshll.u32 %v547, 16
      %v682 = vrot.slane %v680, 5
      %v683 = vor.u32 %v679, %v682
      %v684 = vrot.slane %v683, 4
      %v686 = vshll.u32 %v548, 16
      %v688 = vrot.slane %v686, 5
      %v689 = vsel %vm252, %v684, %v688
      %v690 = vshrl.u32 %v548, 16
      %v692 = vrot.slane %v690, 4
      %v693 = vor.u32 %v692, %v688
      %v694 = vrot.slane %v693, 4
      %v696 = vshll.u32 %v549, 16
      %v698 = vrot.slane %v696, 5
      %v699 = vsel %vm252, %v694, %v698
      %v701 = vshrl.u32 %v550, 16
      %v703 = vrot.slane %v701, 4
      %v704 = vshll.u32 %v550, 16
      %v706 = vrot.slane %v704, 5
      %v707 = vor.u32 %v703, %v706
      %v708 = vrot.slane %v707, 4
      %v710 = vshll.u32 %v551, 16
      %v712 = vrot.slane %v710, 5
      %v713 = vsel %vm252, %v708, %v712
      %v714 = vshrl.u32 %v551, 16
      %v716 = vrot.slane %v714, 4
      %v717 = vor.u32 %v716, %v712
      %v718 = vrot.slane %v717, 4
      %v720 = vshll.u32 %v552, 16
      %v722 = vrot.slane %v720, 5
      %v723 = vsel %vm252, %v718, %v722
      %v725 = vshrl.u32 %v553, 16
      %v727 = vrot.slane %v725, 4
      %v728 = vshll.u32 %v553, 16
      %v730 = vrot.slane %v728, 5
      %v731 = vor.u32 %v727, %v730
      %v732 = vrot.slane %v731, 4
      %v734 = vshll.u32 %v554, 16
      %v736 = vrot.slane %v734, 5
      %v737 = vsel %vm252, %v732, %v736
      %v738 = vshrl.u32 %v554, 16
      %v740 = vrot.slane %v738, 4
      %v741 = vor.u32 %v740, %v736
      %v742 = vrot.slane %v741, 4
      %v744 = vshll.u32 %v555, 16
      %v746 = vrot.slane %v744, 5
      %v747 = vsel %vm252, %v742, %v746
      %v772 = vrot.slane %v532, 5
      %v773 = vrot.slane %v772, 4
      %v774 = vrot.slane %v533, 5
      %v775 = vsel %vm471, %v773, %v774
      %v776 = vrot.slane %v774, 4
      %v777 = vrot.slane %v534, 5
      %v778 = vsel %vm471, %v776, %v777
      %v779 = vrot.slane %v535, 5
      %v780 = vrot.slane %v779, 4
      %v781 = vrot.slane %v536, 5
      %v782 = vsel %vm471, %v780, %v781
      %v783 = vrot.slane %v781, 4
      %v784 = vrot.slane %v537, 5
      %v785 = vsel %vm471, %v783, %v784
      %v786 = vrot.slane %v538, 5
      %v787 = vrot.slane %v786, 4
      %v788 = vrot.slane %v539, 5
      %v789 = vsel %vm471, %v787, %v788
      %v790 = vrot.slane %v788, 4
      %v791 = vrot.slane %v540, 5
      %v792 = vsel %vm471, %v790, %v791
      %v793 = vrot.slane %v541, 5
      %v794 = vrot.slane %v793, 4
      %v795 = vrot.slane %v542, 5
      %v796 = vsel %vm471, %v794, %v795
      %v797 = vrot.slane %v795, 4
      %v798 = vrot.slane %v543, 5
      %v799 = vsel %vm471, %v797, %v798
      %v800 = vrot.slane %v544, 5
      %v801 = vrot.slane %v800, 4
      %v802 = vrot.slane %v545, 5
      %v803 = vsel %vm471, %v801, %v802
      %v804 = vrot.slane %v802, 4
      %v805 = vrot.slane %v546, 5
      %v806 = vsel %vm471, %v804, %v805
      %v807 = vrot.slane %v547, 5
      %v808 = vrot.slane %v807, 4
      %v809 = vrot.slane %v548, 5
      %v810 = vsel %vm471, %v808, %v809
      %v811 = vrot.slane %v809, 4
      %v812 = vrot.slane %v549, 5
      %v813 = vsel %vm471, %v811, %v812
      %v814 = vrot.slane %v550, 5
      %v815 = vrot.slane %v814, 4
      %v816 = vrot.slane %v551, 5
      %v817 = vsel %vm471, %v815, %v816
      %v818 = vrot.slane %v816, 4
      %v819 = vrot.slane %v552, 5
      %v820 = vsel %vm471, %v818, %v819
      %v821 = vrot.slane %v553, 5
      %v822 = vrot.slane %v821, 4
      %v823 = vrot.slane %v554, 5
      %v824 = vsel %vm471, %v822, %v823
      %v825 = vrot.slane %v823, 4
      %v826 = vrot.slane %v555, 5
      %v827 = vsel %vm471, %v825, %v826
      %s828 = sadd.s32 %s222, 2
      %s829 = smul.u32 %s828, 3
      %s830 = smul.addr %s829, 4
      %s831 = scalar_lea.vmem %s210, %s830
      %v832 = vld [vmem:[%s831] sm:$0xf]
      %v833 = vld [vmem:[%s831 + $0x4] sm:$0xf]
      %v834 = vld [vmem:[%s831 + $0x8] sm:$0x1]
      %v835 = vld [vmem:[%s831 + $0xc] sm:$0xf]
      %v836 = vld [vmem:[%s831 + $0x10] sm:$0xf]
      %v837 = vld [vmem:[%s831 + $0x14] sm:$0x1]
      %v838 = vld [vmem:[%s831 + $0x18] sm:$0xf]
      %v839 = vld [vmem:[%s831 + $0x1c] sm:$0xf]
      %v840 = vld [vmem:[%s831 + $0x20] sm:$0x1]
      %v841 = vld [vmem:[%s831 + $0x24] sm:$0xf]
      %v842 = vld [vmem:[%s831 + $0x28] sm:$0xf]
      %v843 = vld [vmem:[%s831 + $0x2c] sm:$0x1]
      %v844 = vld [vmem:[%s831 + $0x30] sm:$0xf]
      %v845 = vld [vmem:[%s831 + $0x34] sm:$0xf]
      %v846 = vld [vmem:[%s831 + $0x38] sm:$0x1]
      %v847 = vld [vmem:[%s831 + $0x3c] sm:$0xf]
      %v848 = vld [vmem:[%s831 + $0x40] sm:$0xf]
      %v849 = vld [vmem:[%s831 + $0x44] sm:$0x1]
      %v850 = vld [vmem:[%s831 + $0x48] sm:$0xf]
      %v851 = vld [vmem:[%s831 + $0x4c] sm:$0xf]
      %v852 = vld [vmem:[%s831 + $0x50] sm:$0x1]
      %v853 = vld [vmem:[%s831 + $0x54] sm:$0xf]
      %v854 = vld [vmem:[%s831 + $0x58] sm:$0xf]
      %v855 = vld [vmem:[%s831 + $0x5c] sm:$0x1]
      %v857 = vshrl.u32 %v832, 16
      %v859 = vrot.slane %v857, 4
      %v860 = vshll.u32 %v832, 16
      %v862 = vrot.slane %v860, 5
      %v863 = vor.u32 %v859, %v862
      %v864 = vrot.slane %v863, 4
      %v866 = vshll.u32 %v833, 16
      %v868 = vrot.slane %v866, 5
      %v869 = vsel %vm252, %v864, %v868
      %v870 = vshrl.u32 %v833, 16
      %v872 = vrot.slane %v870, 4
      %v873 = vor.u32 %v872, %v868
      %v874 = vrot.slane %v873, 4
      %v876 = vshll.u32 %v834, 16
      %v878 = vrot.slane %v876, 5
      %v879 = vsel %vm252, %v874, %v878
      %v881 = vshrl.u32 %v835, 16
      %v883 = vrot.slane %v881, 4
      %v884 = vshll.u32 %v835, 16
      %v886 = vrot.slane %v884, 5
      %v887 = vor.u32 %v883, %v886
      %v888 = vrot.slane %v887, 4
      %v890 = vshll.u32 %v836, 16
      %v892 = vrot.slane %v890, 5
      %v893 = vsel %vm252, %v888, %v892
      %v894 = vshrl.u32 %v836, 16
      %v896 = vrot.slane %v894, 4
      %v897 = vor.u32 %v896, %v892
      %v898 = vrot.slane %v897, 4
      %v900 = vshll.u32 %v837, 16
      %v902 = vrot.slane %v900, 5
      %v903 = vsel %vm252, %v898, %v902
      %v905 = vshrl.u32 %v838, 16
      %v907 = vrot.slane %v905, 4
      %v908 = vshll.u32 %v838, 16
      %v910 = vrot.slane %v908, 5
      %v911 = vor.u32 %v907, %v910
      %v912 = vrot.slane %v911, 4
      %v914 = vshll.u32 %v839, 16
      %v916 = vrot.slane %v914, 5
      %v917 = vsel %vm252, %v912, %v916
      %v918 = vshrl.u32 %v839, 16
      %v920 = vrot.slane %v918, 4
      %v921 = vor.u32 %v920, %v916
      %v922 = vrot.slane %v921, 4
      %v924 = vshll.u32 %v840, 16
      %v926 = vrot.slane %v924, 5
      %v927 = vsel %vm252, %v922, %v926
      %v929 = vshrl.u32 %v841, 16
      %v931 = vrot.slane %v929, 4
      %v932 = vshll.u32 %v841, 16
      %v934 = vrot.slane %v932, 5
      %v935 = vor.u32 %v931, %v934
      %v936 = vrot.slane %v935, 4
      %v938 = vshll.u32 %v842, 16
      %v940 = vrot.slane %v938, 5
      %v941 = vsel %vm252, %v936, %v940
      %v942 = vshrl.u32 %v842, 16
      %v944 = vrot.slane %v942, 4
      %v945 = vor.u32 %v944, %v940
      %v946 = vrot.slane %v945, 4
      %v948 = vshll.u32 %v843, 16
      %v950 = vrot.slane %v948, 5
      %v951 = vsel %vm252, %v946, %v950
      %v953 = vshrl.u32 %v844, 16
      %v955 = vrot.slane %v953, 4
      %v956 = vshll.u32 %v844, 16
      %v958 = vrot.slane %v956, 5
      %v959 = vor.u32 %v955, %v958
      %v960 = vrot.slane %v959, 4
      %v962 = vshll.u32 %v845, 16
      %v964 = vrot.slane %v962, 5
      %v965 = vsel %vm252, %v960, %v964
      %v966 = vshrl.u32 %v845, 16
      %v968 = vrot.slane %v966, 4
      %v969 = vor.u32 %v968, %v964
      %v970 = vrot.slane %v969, 4
      %v972 = vshll.u32 %v846, 16
      %v974 = vrot.slane %v972, 5
      %v975 = vsel %vm252, %v970, %v974
      %v977 = vshrl.u32 %v847, 16
      %v979 = vrot.slane %v977, 4
      %v980 = vshll.u32 %v847, 16
      %v982 = vrot.slane %v980, 5
      %v983 = vor.u32 %v979, %v982
      %v984 = vrot.slane %v983, 4
      %v986 = vshll.u32 %v848, 16
      %v988 = vrot.slane %v986, 5
      %v989 = vsel %vm252, %v984, %v988
      %v990 = vshrl.u32 %v848, 16
      %v992 = vrot.slane %v990, 4
      %v993 = vor.u32 %v992, %v988
      %v994 = vrot.slane %v993, 4
      %v996 = vshll.u32 %v849, 16
      %v998 = vrot.slane %v996, 5
      %v999 = vsel %vm252, %v994, %v998
      %v1001 = vshrl.u32 %v850, 16
      %v1003 = vrot.slane %v1001, 4
      %v1004 = vshll.u32 %v850, 16
      %v1006 = vrot.slane %v1004, 5
      %v1007 = vor.u32 %v1003, %v1006
      %v1008 = vrot.slane %v1007, 4
      %v1010 = vshll.u32 %v851, 16
      %v1012 = vrot.slane %v1010, 5
      %v1013 = vsel %vm252, %v1008, %v1012
      %v1014 = vshrl.u32 %v851, 16
      %v1016 = vrot.slane %v1014, 4
      %v1017 = vor.u32 %v1016, %v1012
      %v1018 = vrot.slane %v1017, 4
      %v1020 = vshll.u32 %v852, 16
      %v1022 = vrot.slane %v1020, 5
      %v1023 = vsel %vm252, %v1018, %v1022
      %v1025 = vshrl.u32 %v853, 16
      %v1027 = vrot.slane %v1025, 4
      %v1028 = vshll.u32 %v853, 16
      %v1030 = vrot.slane %v1028, 5
      %v1031 = vor.u32 %v1027, %v1030
      %v1032 = vrot.slane %v1031, 4
      %v1034 = vshll.u32 %v854, 16
      %v1036 = vrot.slane %v1034, 5
      %v1037 = vsel %vm252, %v1032, %v1036
      %v1038 = vshrl.u32 %v854, 16
      %v1040 = vrot.slane %v1038, 4
      %v1041 = vor.u32 %v1040, %v1036
      %v1042 = vrot.slane %v1041, 4
      %v1044 = vshll.u32 %v855, 16
      %v1046 = vrot.slane %v1044, 5
      %v1047 = vsel %vm252, %v1042, %v1046
      %v1072 = vrot.slane %v832, 5
      %v1073 = vrot.slane %v1072, 4
      %v1074 = vrot.slane %v833, 5
      %v1075 = vsel %vm471, %v1073, %v1074
      %v1076 = vrot.slane %v1074, 4
      %v1077 = vrot.slane %v834, 5
      %v1078 = vsel %vm471, %v1076, %v1077
      %v1079 = vrot.slane %v835, 5
      %v1080 = vrot.slane %v1079, 4
      %v1081 = vrot.slane %v836, 5
      %v1082 = vsel %vm471, %v1080, %v1081
      %v1083 = vrot.slane %v1081, 4
      %v1084 = vrot.slane %v837, 5
      %v1085 = vsel %vm471, %v1083, %v1084
      %v1086 = vrot.slane %v838, 5
      %v1087 = vrot.slane %v1086, 4
      %v1088 = vrot.slane %v839, 5
      %v1089 = vsel %vm471, %v1087, %v1088
      %v1090 = vrot.slane %v1088, 4
      %v1091 = vrot.slane %v840, 5
      %v1092 = vsel %vm471, %v1090, %v1091
      %v1093 = vrot.slane %v841, 5
      %v1094 = vrot.slane %v1093, 4
      %v1095 = vrot.slane %v842, 5
      %v1096 = vsel %vm471, %v1094, %v1095
      %v1097 = vrot.slane %v1095, 4
      %v1098 = vrot.slane %v843, 5
      %v1099 = vsel %vm471, %v1097, %v1098
      %v1100 = vrot.slane %v844, 5
      %v1101 = vrot.slane %v1100, 4
      %v1102 = vrot.slane %v845, 5
      %v1103 = vsel %vm471, %v1101, %v1102
      %v1104 = vrot.slane %v1102, 4
      %v1105 = vrot.slane %v846, 5
      %v1106 = vsel %vm471, %v1104, %v1105
      %v1107 = vrot.slane %v847, 5
      %v1108 = vrot.slane %v1107, 4
      %v1109 = vrot.slane %v848, 5
      %v1110 = vsel %vm471, %v1108, %v1109
      %v1111 = vrot.slane %v1109, 4
      %v1112 = vrot.slane %v849, 5
      %v1113 = vsel %vm471, %v1111, %v1112
      %v1114 = vrot.slane %v850, 5
      %v1115 = vrot.slane %v1114, 4
      %v1116 = vrot.slane %v851, 5
      %v1117 = vsel %vm471, %v1115, %v1116
      %v1118 = vrot.slane %v1116, 4
      %v1119 = vrot.slane %v852, 5
      %v1120 = vsel %vm471, %v1118, %v1119
      %v1121 = vrot.slane %v853, 5
      %v1122 = vrot.slane %v1121, 4
      %v1123 = vrot.slane %v854, 5
      %v1124 = vsel %vm471, %v1122, %v1123
      %v1125 = vrot.slane %v1123, 4
      %v1126 = vrot.slane %v855, 5
      %v1127 = vsel %vm471, %v1125, %v1126
      %v1128 = vunpack.c.l.b16 %v226
      %v1129 = vunpack.c.l.b16 %v227
      %v1130 = vunpack.c.l.b16 %v229
      %v1131 = vunpack.c.l.b16 %v230
      %v1132 = vunpack.c.l.b16 %v232
      %v1133 = vunpack.c.l.b16 %v233
      %v1134 = vunpack.c.l.b16 %v235
      %v1135 = vunpack.c.l.b16 %v236
      %v1136 = vunpack.c.l.b16 %v238
      %v1137 = vunpack.c.l.b16 %v239
      %v1138 = vunpack.c.l.b16 %v241
      %v1139 = vunpack.c.l.b16 %v242
      %v1140 = vunpack.c.l.b16 %v244
      %v1141 = vunpack.c.l.b16 %v245
      %v1142 = vunpack.c.l.b16 %v247
      %v1143 = vunpack.c.l.b16 %v248
      %v1144 = vpack.c.b16 %v1129, %v1128
      %v1145 = vpack.c.b16 %v1131, %v1130
      %v1146 = vpack.c.b16 %v1133, %v1132
      %v1147 = vpack.c.b16 %v1135, %v1134
      %v1148 = vpack.c.b16 %v1137, %v1136
      %v1149 = vpack.c.b16 %v1139, %v1138
      %v1150 = vpack.c.b16 %v1141, %v1140
      %v1151 = vpack.c.b16 %v1143, %v1142
      %v1152 = vunpack.c.l.b16 %v266
      %v1153 = vunpack.c.l.b16 %v276
      %v1154 = vunpack.c.l.b16 %v290
      %v1155 = vunpack.c.l.b16 %v300
      %v1156 = vunpack.c.l.b16 %v314
      %v1157 = vunpack.c.l.b16 %v324
      %v1158 = vunpack.c.l.b16 %v338
      %v1159 = vunpack.c.l.b16 %v348
      %v1160 = vunpack.c.l.b16 %v362
      %v1161 = vunpack.c.l.b16 %v372
      %v1162 = vunpack.c.l.b16 %v386
      %v1163 = vunpack.c.l.b16 %v396
      %v1164 = vunpack.c.l.b16 %v410
      %v1165 = vunpack.c.l.b16 %v420
      %v1166 = vunpack.c.l.b16 %v434
      %v1167 = vunpack.c.l.b16 %v444
      %v1168 = vpack.c.b16 %v1153, %v1152
      %v1169 = vpack.c.b16 %v1155, %v1154
      %v1170 = vpack.c.b16 %v1157, %v1156
      %v1171 = vpack.c.b16 %v1159, %v1158
      %v1172 = vpack.c.b16 %v1161, %v1160
      %v1173 = vpack.c.b16 %v1163, %v1162
      %v1174 = vpack.c.b16 %v1165, %v1164
      %v1175 = vpack.c.b16 %v1167, %v1166
      %1176 = vrot.lane.b32.xlu0 %v1168, 4
      %v1177 = vpop.permute.xlu0 %1176
      %1178 = vrot.lane.b32.xlu0 %v1169, 4
      %v1179 = vpop.permute.xlu0 %1178
      %1180 = vrot.lane.b32.xlu0 %v1170, 4
      %v1181 = vpop.permute.xlu0 %1180
      %1182 = vrot.lane.b32.xlu0 %v1171, 4
      %v1183 = vpop.permute.xlu0 %1182
      %1184 = vrot.lane.b32.xlu0 %v1172, 4
      %v1185 = vpop.permute.xlu0 %1184
      %1186 = vrot.lane.b32.xlu0 %v1173, 4
      %v1187 = vpop.permute.xlu0 %1186
      %1188 = vrot.lane.b32.xlu0 %v1174, 4
      %v1189 = vpop.permute.xlu0 %1188
      %1190 = vrot.lane.b32.xlu0 %v1175, 4
      %v1191 = vpop.permute.xlu0 %1190
      %v1192 = vunpack.c.l.b16 %v475
      %v1193 = vunpack.c.l.b16 %v478
      %v1194 = vunpack.c.l.b16 %v482
      %v1195 = vunpack.c.l.b16 %v485
      %v1196 = vunpack.c.l.b16 %v489
      %v1197 = vunpack.c.l.b16 %v492
      %v1198 = vunpack.c.l.b16 %v496
      %v1199 = vunpack.c.l.b16 %v499
      %v1200 = vunpack.c.l.b16 %v503
      %v1201 = vunpack.c.l.b16 %v506
      %v1202 = vunpack.c.l.b16 %v510
      %v1203 = vunpack.c.l.b16 %v513
      %v1204 = vunpack.c.l.b16 %v517
      %v1205 = vunpack.c.l.b16 %v520
      %v1206 = vunpack.c.l.b16 %v524
      %v1207 = vunpack.c.l.b16 %v527
      %v1208 = vpack.c.b16 %v1193, %v1192
      %v1209 = vpack.c.b16 %v1195, %v1194
      %v1210 = vpack.c.b16 %v1197, %v1196
      %v1211 = vpack.c.b16 %v1199, %v1198
      %v1212 = vpack.c.b16 %v1201, %v1200
      %v1213 = vpack.c.b16 %v1203, %v1202
      %v1214 = vpack.c.b16 %v1205, %v1204
      %v1215 = vpack.c.b16 %v1207, %v1206
      %1216 = vrot.lane.b32.xlu0 %v1208, 8
      %v1217 = vpop.permute.xlu0 %1216
      %1218 = vrot.lane.b32.xlu0 %v1209, 8
      %v1219 = vpop.permute.xlu0 %1218
      %1220 = vrot.lane.b32.xlu0 %v1210, 8
      %v1221 = vpop.permute.xlu0 %1220
      %1222 = vrot.lane.b32.xlu0 %v1211, 8
      %v1223 = vpop.permute.xlu0 %1222
      %1224 = vrot.lane.b32.xlu0 %v1212, 8
      %v1225 = vpop.permute.xlu0 %1224
      %1226 = vrot.lane.b32.xlu0 %v1213, 8
      %v1227 = vpop.permute.xlu0 %1226
      %1228 = vrot.lane.b32.xlu0 %v1214, 8
      %v1229 = vpop.permute.xlu0 %1228
      %1230 = vrot.lane.b32.xlu0 %v1215, 8
      %v1231 = vpop.permute.xlu0 %1230
      %v1232 = vunpack.c.l.b16 %v532
      %v1233 = vunpack.c.l.b16 %v533
      %v1234 = vunpack.c.l.b16 %v535
      %v1235 = vunpack.c.l.b16 %v536
      %v1236 = vunpack.c.l.b16 %v538
      %v1237 = vunpack.c.l.b16 %v539
      %v1238 = vunpack.c.l.b16 %v541
      %v1239 = vunpack.c.l.b16 %v542
      %v1240 = vunpack.c.l.b16 %v544
      %v1241 = vunpack.c.l.b16 %v545
      %v1242 = vunpack.c.l.b16 %v547
      %v1243 = vunpack.c.l.b16 %v548
      %v1244 = vunpack.c.l.b16 %v550
      %v1245 = vunpack.c.l.b16 %v551
      %v1246 = vunpack.c.l.b16 %v553
      %v1247 = vunpack.c.l.b16 %v554
      %v1248 = vpack.c.b16 %v1233, %v1232
      %v1249 = vpack.c.b16 %v1235, %v1234
      %v1250 = vpack.c.b16 %v1237, %v1236
      %v1251 = vpack.c.b16 %v1239, %v1238
      %v1252 = vpack.c.b16 %v1241, %v1240
      %v1253 = vpack.c.b16 %v1243, %v1242
      %v1254 = vpack.c.b16 %v1245, %v1244
      %v1255 = vpack.c.b16 %v1247, %v1246
      %1256 = vrot.lane.b32.xlu0 %v1248, 12
      %v1257 = vpop.permute.xlu0 %1256
      %1258 = vrot.lane.b32.xlu0 %v1249, 12
      %v1259 = vpop.permute.xlu0 %1258
      %1260 = vrot.lane.b32.xlu0 %v1250, 12
      %v1261 = vpop.permute.xlu0 %1260
      %1262 = vrot.lane.b32.xlu0 %v1251, 12
      %v1263 = vpop.permute.xlu0 %1262
      %1264 = vrot.lane.b32.xlu0 %v1252, 12
      %v1265 = vpop.permute.xlu0 %1264
      %1266 = vrot.lane.b32.xlu0 %v1253, 12
      %v1267 = vpop.permute.xlu0 %1266
      %1268 = vrot.lane.b32.xlu0 %v1254, 12
      %v1269 = vpop.permute.xlu0 %1268
      %1270 = vrot.lane.b32.xlu0 %v1255, 12
      %v1271 = vpop.permute.xlu0 %1270
      %v1272 = vunpack.c.l.b16 %v569
      %v1273 = vunpack.c.l.b16 %v579
      %v1274 = vunpack.c.l.b16 %v593
      %v1275 = vunpack.c.l.b16 %v603
      %v1276 = vunpack.c.l.b16 %v617
      %v1277 = vunpack.c.l.b16 %v627
      %v1278 = vunpack.c.l.b16 %v641
      %v1279 = vunpack.c.l.b16 %v651
      %v1280 = vunpack.c.l.b16 %v665
      %v1281 = vunpack.c.l.b16 %v675
      %v1282 = vunpack.c.l.b16 %v689
      %v1283 = vunpack.c.l.b16 %v699
      %v1284 = vunpack.c.l.b16 %v713
      %v1285 = vunpack.c.l.b16 %v723
      %v1286 = vunpack.c.l.b16 %v737
      %v1287 = vunpack.c.l.b16 %v747
      %v1288 = vpack.c.b16 %v1273, %v1272
      %v1289 = vpack.c.b16 %v1275, %v1274
      %v1290 = vpack.c.b16 %v1277, %v1276
      %v1291 = vpack.c.b16 %v1279, %v1278
      %v1292 = vpack.c.b16 %v1281, %v1280
      %v1293 = vpack.c.b16 %v1283, %v1282
      %v1294 = vpack.c.b16 %v1285, %v1284
      %v1295 = vpack.c.b16 %v1287, %v1286
      %1296 = vrot.lane.b32.xlu0 %v1288, 16
      %v1297 = vpop.permute.xlu0 %1296
      %1298 = vrot.lane.b32.xlu0 %v1289, 16
      %v1299 = vpop.permute.xlu0 %1298
      %1300 = vrot.lane.b32.xlu0 %v1290, 16
      %v1301 = vpop.permute.xlu0 %1300
      %1302 = vrot.lane.b32.xlu0 %v1291, 16
      %v1303 = vpop.permute.xlu0 %1302
      %1304 = vrot.lane.b32.xlu0 %v1292, 16
      %v1305 = vpop.permute.xlu0 %1304
      %1306 = vrot.lane.b32.xlu0 %v1293, 16
      %v1307 = vpop.permute.xlu0 %1306
      %1308 = vrot.lane.b32.xlu0 %v1294, 16
      %v1309 = vpop.permute.xlu0 %1308
      %1310 = vrot.lane.b32.xlu0 %v1295, 16
      %v1311 = vpop.permute.xlu0 %1310
      %v1312 = vunpack.c.l.b16 %v775
      %v1313 = vunpack.c.l.b16 %v778
      %v1314 = vunpack.c.l.b16 %v782
      %v1315 = vunpack.c.l.b16 %v785
      %v1316 = vunpack.c.l.b16 %v789
      %v1317 = vunpack.c.l.b16 %v792
      %v1318 = vunpack.c.l.b16 %v796
      %v1319 = vunpack.c.l.b16 %v799
      %v1320 = vunpack.c.l.b16 %v803
      %v1321 = vunpack.c.l.b16 %v806
      %v1322 = vunpack.c.l.b16 %v810
      %v1323 = vunpack.c.l.b16 %v813
      %v1324 = vunpack.c.l.b16 %v817
      %v1325 = vunpack.c.l.b16 %v820
      %v1326 = vunpack.c.l.b16 %v824
      %v1327 = vunpack.c.l.b16 %v827
      %v1328 = vpack.c.b16 %v1313, %v1312
      %v1329 = vpack.c.b16 %v1315, %v1314
      %v1330 = vpack.c.b16 %v1317, %v1316
      %v1331 = vpack.c.b16 %v1319, %v1318
      %v1332 = vpack.c.b16 %v1321, %v1320
      %v1333 = vpack.c.b16 %v1323, %v1322
      %v1334 = vpack.c.b16 %v1325, %v1324
      %v1335 = vpack.c.b16 %v1327, %v1326
      %1336 = vrot.lane.b32.xlu0 %v1328, 20
      %v1337 = vpop.permute.xlu0 %1336
      %1338 = vrot.lane.b32.xlu0 %v1329, 20
      %v1339 = vpop.permute.xlu0 %1338
      %1340 = vrot.lane.b32.xlu0 %v1330, 20
      %v1341 = vpop.permute.xlu0 %1340
      %1342 = vrot.lane.b32.xlu0 %v1331, 20
      %v1343 = vpop.permute.xlu0 %1342
      %1344 = vrot.lane.b32.xlu0 %v1332, 20
      %v1345 = vpop.permute.xlu0 %1344
      %1346 = vrot.lane.b32.xlu0 %v1333, 20
      %v1347 = vpop.permute.xlu0 %1346
      %1348 = vrot.lane.b32.xlu0 %v1334, 20
      %v1349 = vpop.permute.xlu0 %1348
      %1350 = vrot.lane.b32.xlu0 %v1335, 20
      %v1351 = vpop.permute.xlu0 %1350
      %v1352 = vunpack.c.l.b16 %v832
      %v1353 = vunpack.c.l.b16 %v833
      %v1354 = vunpack.c.l.b16 %v835
      %v1355 = vunpack.c.l.b16 %v836
      %v1356 = vunpack.c.l.b16 %v838
      %v1357 = vunpack.c.l.b16 %v839
      %v1358 = vunpack.c.l.b16 %v841
      %v1359 = vunpack.c.l.b16 %v842
      %v1360 = vunpack.c.l.b16 %v844
      %v1361 = vunpack.c.l.b16 %v845
      %v1362 = vunpack.c.l.b16 %v847
      %v1363 = vunpack.c.l.b16 %v848
      %v1364 = vunpack.c.l.b16 %v850
      %v1365 = vunpack.c.l.b16 %v851
      %v1366 = vunpack.c.l.b16 %v853
      %v1367 = vunpack.c.l.b16 %v854
      %v1368 = vpack.c.b16 %v1353, %v1352
      %v1369 = vpack.c.b16 %v1355, %v1354
      %v1370 = vpack.c.b16 %v1357, %v1356
      %v1371 = vpack.c.b16 %v1359, %v1358
      %v1372 = vpack.c.b16 %v1361, %v1360
      %v1373 = vpack.c.b16 %v1363, %v1362
      %v1374 = vpack.c.b16 %v1365, %v1364
      %v1375 = vpack.c.b16 %v1367, %v1366
      %1376 = vrot.lane.b32.xlu0 %v1368, 24
      %v1377 = vpop.permute.xlu0 %1376
      %1378 = vrot.lane.b32.xlu0 %v1369, 24
      %v1379 = vpop.permute.xlu0 %1378
      %1380 = vrot.lane.b32.xlu0 %v1370, 24
      %v1381 = vpop.permute.xlu0 %1380
      %1382 = vrot.lane.b32.xlu0 %v1371, 24
      %v1383 = vpop.permute.xlu0 %1382
      %1384 = vrot.lane.b32.xlu0 %v1372, 24
      %v1385 = vpop.permute.xlu0 %1384
      %1386 = vrot.lane.b32.xlu0 %v1373, 24
      %v1387 = vpop.permute.xlu0 %1386
      %1388 = vrot.lane.b32.xlu0 %v1374, 24
      %v1389 = vpop.permute.xlu0 %1388
      %1390 = vrot.lane.b32.xlu0 %v1375, 24
      %v1391 = vpop.permute.xlu0 %1390
      %v1392 = vunpack.c.l.b16 %v869
      %v1393 = vunpack.c.l.b16 %v879
      %v1394 = vunpack.c.l.b16 %v893
      %v1395 = vunpack.c.l.b16 %v903
      %v1396 = vunpack.c.l.b16 %v917
      %v1397 = vunpack.c.l.b16 %v927
      %v1398 = vunpack.c.l.b16 %v941
      %v1399 = vunpack.c.l.b16 %v951
      %v1400 = vunpack.c.l.b16 %v965
      %v1401 = vunpack.c.l.b16 %v975
      %v1402 = vunpack.c.l.b16 %v989
      %v1403 = vunpack.c.l.b16 %v999
      %v1404 = vunpack.c.l.b16 %v1013
      %v1405 = vunpack.c.l.b16 %v1023
      %v1406 = vunpack.c.l.b16 %v1037
      %v1407 = vunpack.c.l.b16 %v1047
      %v1408 = vpack.c.b16 %v1393, %v1392
      %v1409 = vpack.c.b16 %v1395, %v1394
      %v1410 = vpack.c.b16 %v1397, %v1396
      %v1411 = vpack.c.b16 %v1399, %v1398
      %v1412 = vpack.c.b16 %v1401, %v1400
      %v1413 = vpack.c.b16 %v1403, %v1402
      %v1414 = vpack.c.b16 %v1405, %v1404
      %v1415 = vpack.c.b16 %v1407, %v1406
      %1416 = vrot.lane.b32.xlu0 %v1408, 28
      %v1417 = vpop.permute.xlu0 %1416
      %1418 = vrot.lane.b32.xlu0 %v1409, 28
      %v1419 = vpop.permute.xlu0 %1418
      %1420 = vrot.lane.b32.xlu0 %v1410, 28
      %v1421 = vpop.permute.xlu0 %1420
      %1422 = vrot.lane.b32.xlu0 %v1411, 28
      %v1423 = vpop.permute.xlu0 %1422
      %1424 = vrot.lane.b32.xlu0 %v1412, 28
      %v1425 = vpop.permute.xlu0 %1424
      %1426 = vrot.lane.b32.xlu0 %v1413, 28
      %v1427 = vpop.permute.xlu0 %1426
      %1428 = vrot.lane.b32.xlu0 %v1414, 28
      %v1429 = vpop.permute.xlu0 %1428
      %1430 = vrot.lane.b32.xlu0 %v1415, 28
      %v1431 = vpop.permute.xlu0 %1430
      %v1432 = vunpack.c.l.b16 %v1075
      %v1433 = vunpack.c.l.b16 %v1078
      %v1434 = vunpack.c.l.b16 %v1082
      %v1435 = vunpack.c.l.b16 %v1085
      %v1436 = vunpack.c.l.b16 %v1089
      %v1437 = vunpack.c.l.b16 %v1092
      %v1438 = vunpack.c.l.b16 %v1096
      %v1439 = vunpack.c.l.b16 %v1099
      %v1440 = vunpack.c.l.b16 %v1103
      %v1441 = vunpack.c.l.b16 %v1106
      %v1442 = vunpack.c.l.b16 %v1110
      %v1443 = vunpack.c.l.b16 %v1113
      %v1444 = vunpack.c.l.b16 %v1117
      %v1445 = vunpack.c.l.b16 %v1120
      %v1446 = vunpack.c.l.b16 %v1124
      %v1447 = vunpack.c.l.b16 %v1127
      %v1448 = vpack.c.b16 %v1433, %v1432
      %v1449 = vpack.c.b16 %v1435, %v1434
      %v1450 = vpack.c.b16 %v1437, %v1436
      %v1451 = vpack.c.b16 %v1439, %v1438
      %v1452 = vpack.c.b16 %v1441, %v1440
      %v1453 = vpack.c.b16 %v1443, %v1442
      %v1454 = vpack.c.b16 %v1445, %v1444
      %v1455 = vpack.c.b16 %v1447, %v1446
      %1456 = vrot.lane.b32.xlu0 %v1448, 32
      %v1457 = vpop.permute.xlu0 %1456
      %1458 = vrot.lane.b32.xlu0 %v1449, 32
      %v1459 = vpop.permute.xlu0 %1458
      %1460 = vrot.lane.b32.xlu0 %v1450, 32
      %v1461 = vpop.permute.xlu0 %1460
      %1462 = vrot.lane.b32.xlu0 %v1451, 32
      %v1463 = vpop.permute.xlu0 %1462
      %1464 = vrot.lane.b32.xlu0 %v1452, 32
      %v1465 = vpop.permute.xlu0 %1464
      %1466 = vrot.lane.b32.xlu0 %v1453, 32
      %v1467 = vpop.permute.xlu0 %1466
      %1468 = vrot.lane.b32.xlu0 %v1454, 32
      %v1469 = vpop.permute.xlu0 %1468
      %1470 = vrot.lane.b32.xlu0 %v1455, 32
      %v1471 = vpop.permute.xlu0 %1470
      %vm1472 = vcmask 31744
      %v1475 = vsel %vm1472, %v1144, %v1177
      %v1478 = vsel %vm1472, %v1145, %v1179
      %v1481 = vsel %vm1472, %v1146, %v1181
      %v1484 = vsel %vm1472, %v1147, %v1183
      %v1487 = vsel %vm1472, %v1148, %v1185
      %v1490 = vsel %vm1472, %v1149, %v1187
      %v1493 = vsel %vm1472, %v1150, %v1189
      %v1496 = vsel %vm1472, %v1151, %v1191
      %vm1497 = vcmask 64512
      %v1499 = vsel %vm1497, %v1475, %v1217
      %v1501 = vsel %vm1497, %v1478, %v1219
      %v1503 = vsel %vm1497, %v1481, %v1221
      %v1505 = vsel %vm1497, %v1484, %v1223
      %v1507 = vsel %vm1497, %v1487, %v1225
      %v1509 = vsel %vm1497, %v1490, %v1227
      %v1511 = vsel %vm1497, %v1493, %v1229
      %v1513 = vsel %vm1497, %v1496, %v1231
      %vm1514 = vcmask 97280
      %v1516 = vsel %vm1514, %v1499, %v1257
      %v1518 = vsel %vm1514, %v1501, %v1259
      %v1520 = vsel %vm1514, %v1503, %v1261
      %v1522 = vsel %vm1514, %v1505, %v1263
      %v1524 = vsel %vm1514, %v1507, %v1265
      %v1526 = vsel %vm1514, %v1509, %v1267
      %v1528 = vsel %vm1514, %v1511, %v1269
      %v1530 = vsel %vm1514, %v1513, %v1271
      %vm1531 = vcmask 130048
      %v1533 = vsel %vm1531, %v1516, %v1297
      %v1535 = vsel %vm1531, %v1518, %v1299
      %v1537 = vsel %vm1531, %v1520, %v1301
      %v1539 = vsel %vm1531, %v1522, %v1303
      %v1541 = vsel %vm1531, %v1524, %v1305
      %v1543 = vsel %vm1531, %v1526, %v1307
      %v1545 = vsel %vm1531, %v1528, %v1309
      %v1547 = vsel %vm1531, %v1530, %v1311
      %vm1548 = vcmask 162816
      %v1550 = vsel %vm1548, %v1533, %v1337
      %v1552 = vsel %vm1548, %v1535, %v1339
      %v1554 = vsel %vm1548, %v1537, %v1341
      %v1556 = vsel %vm1548, %v1539, %v1343
      %v1558 = vsel %vm1548, %v1541, %v1345
      %v1560 = vsel %vm1548, %v1543, %v1347
      %v1562 = vsel %vm1548, %v1545, %v1349
      %v1564 = vsel %vm1548, %v1547, %v1351
      %vm1565 = vcmask 195584
      %v1567 = vsel %vm1565, %v1550, %v1377
      %v1569 = vsel %vm1565, %v1552, %v1379
      %v1571 = vsel %vm1565, %v1554, %v1381
      %v1573 = vsel %vm1565, %v1556, %v1383
      %v1575 = vsel %vm1565, %v1558, %v1385
      %v1577 = vsel %vm1565, %v1560, %v1387
      %v1579 = vsel %vm1565, %v1562, %v1389
      %v1581 = vsel %vm1565, %v1564, %v1391
      %vm1582 = vcmask 228352
      %v1584 = vsel %vm1582, %v1567, %v1417
      %v1586 = vsel %vm1582, %v1569, %v1419
      %v1588 = vsel %vm1582, %v1571, %v1421
      %v1590 = vsel %vm1582, %v1573, %v1423
      %v1592 = vsel %vm1582, %v1575, %v1425
      %v1594 = vsel %vm1582, %v1577, %v1427
      %v1596 = vsel %vm1582, %v1579, %v1429
      %v1598 = vsel %vm1582, %v1581, %v1431
      %vm1599 = vcmask 261120
      %v1601 = vsel %vm1599, %v1584, %v1457
      %v1603 = vsel %vm1599, %v1586, %v1459
      %v1605 = vsel %vm1599, %v1588, %v1461
      %v1607 = vsel %vm1599, %v1590, %v1463
      %v1609 = vsel %vm1599, %v1592, %v1465
      %v1611 = vsel %vm1599, %v1594, %v1467
      %v1613 = vsel %vm1599, %v1596, %v1469
      %v1615 = vsel %vm1599, %v1598, %v1471
      %v1616 = vld [vmem:[%s1] sm:$0xf]
      %v1617 = vld [vmem:[%s1 + $0x4] sm:$0xf]
      %v1618 = vld [vmem:[%s1 + $0x8] sm:$0xf]
      %v1619 = vld [vmem:[%s1 + $0xc] sm:$0xf]
      %v1620 = vld [vmem:[%s1 + $0x10] sm:$0x3]
      %v1621 = vld [vmem:[%s2] sm:$0x1]
      %v1623 = vlaneseq
      %v1624 = vshrl.u32 %v1623, 7
      %v1625 = vsub.s32 0, %v1624
      %v1626 = vrot.slane %v1621, %v1625
      %v1633 = vunpack.c.l.b16 %v1616
      %v1634 = vunpack.c.l.b16 %v1617
      %v1635 = vunpack.c.l.b16 %v1618
      %v1636 = vunpack.c.l.b16 %v1619
      %v1637 = vunpack.c.l.b16 %v1620
      %v1638 = vpack.c.b16 %v1634, %v1633
      %v1639 = vpack.c.b16 %v1636, %v1635
      %v1640 = vpack.c.b16 %v1637, %v1637
      %vm1643 = vcmask 293888
      %v1644 = vsel %vm1643, %v1601, 0
      %v1646 = vsel %vm1643, %v1603, 0
      %v1648 = vsel %vm1643, %v1605, 0
      %v1650 = vsel %vm1643, %v1607, 0
      %v1652 = vsel %vm1643, %v1609, 0
      %v1654 = vsel %vm1643, %v1611, 0
      %v1656 = vsel %vm1643, %v1613, 0
      %v1658 = vsel %vm1643, %v1615, 0
      %vm1660 = vcmask 1041408
      %v1662 = vsel %vm1660, %v1640, 0
      %1664 = vmatprep.subr.bf16.mxu0 0
      %1665 = vmatpush1.bf16.msra.mxu0 0
      %1666 = vmatprep.subr.bf16.mxu0 0
      %1667 = vmatpush1.bf16.msra.mxu0 0
      %1668 = vmatprep.subr.bf16.mxu0 0
      %1669 = vmatpush1.bf16.msra.mxu0 0
      %1670 = vmatprep.subr.bf16.mxu0 0
      %1671 = vmatpush1.bf16.msra.mxu0 0
      %1672 = vmatprep.subr.bf16.mxu0 0
      %1673 = vmatpush1.bf16.msra.mxu0 0
      %1674 = vmatprep.subr.bf16.mxu0 0
      %1675 = vmatpush1.bf16.msra.mxu0 %v1662
      %1676 = vmatprep.subr.bf16.mxu0 0
      %1677 = vmatpush1.bf16.msra.mxu0 %v1639
      %1678 = vmatprep.subr.bf16.mxu0 0
      %1679 = vmatpush1.bf16.msra.mxu0 %v1638
      %1680 = vmatprep.subr.bf16.mxu0 0
      %1681 = vmatpush2.bf16.msra.mxu0 0
      %1682 = vmatprep.subr.bf16.mxu0 0
      %1683 = vmatpush2.bf16.msra.mxu0 0
      %1684 = vmatprep.subr.bf16.mxu0 0
      %1685 = vmatpush2.bf16.msra.mxu0 0
      %1686 = vmatprep.subr.bf16.mxu0 0
      %1687 = vmatpush2.bf16.msra.mxu0 0
      %1688 = vmatprep.subr.bf16.mxu0 0
      %1689 = vmatpush2.bf16.msra.mxu0 0
      %1690 = vmatprep.subr.bf16.mxu0 0
      %1691 = vmatpush2.bf16.msra.mxu0 0
      %1692 = vmatprep.subr.bf16.mxu0 0
      %1693 = vmatpush2.bf16.msra.mxu0 0
      %1694 = vmatprep.subr.bf16.mxu0 0
      %1695 = vmatpush2.bf16.msra.mxu0 0
      %1696 = vmatprep.mubr.bf16.mxu0 0
      %1697 = vmatmul.mubr.bf16.gmra.mxu0 %v1644
      %v1698 = vpop.f32.mrf.mxu0
      %v1699 = vadd.f32 %v1626, %v1698
      %v1700 = vpop.f32.mrf.mxu0
      %v1701 = vpop.f32.mrf.mxu0
      %v1702 = vadd.f32 %v1626, %v1701
      %v1703 = vpop.f32.mrf.mxu0
      %1704 = vmatprep.mubr.bf16.mxu0 0
      %1705 = vmatmul.mubr.bf16.gmra.mxu0 %v1646
      %v1706 = vpop.f32.mrf.mxu0
      %v1707 = vadd.f32 %v1626, %v1706
      %v1708 = vpop.f32.mrf.mxu0
      %v1709 = vpop.f32.mrf.mxu0
      %v1710 = vadd.f32 %v1626, %v1709
      %v1711 = vpop.f32.mrf.mxu0
      %1712 = vmatprep.mubr.bf16.mxu0 0
      %1713 = vmatmul.mubr.bf16.gmra.mxu0 %v1648
      %v1714 = vpop.f32.mrf.mxu0
      %v1715 = vadd.f32 %v1626, %v1714
      %v1716 = vpop.f32.mrf.mxu0
      %v1717 = vpop.f32.mrf.mxu0
      %v1718 = vadd.f32 %v1626, %v1717
      %v1719 = vpop.f32.mrf.mxu0
      %1720 = vmatprep.mubr.bf16.mxu0 0
      %1721 = vmatmul.mubr.bf16.gmra.mxu0 %v1650
      %v1722 = vpop.f32.mrf.mxu0
      %v1723 = vadd.f32 %v1626, %v1722
      %v1724 = vpop.f32.mrf.mxu0
      %v1725 = vpop.f32.mrf.mxu0
      %v1726 = vadd.f32 %v1626, %v1725
      %v1727 = vpop.f32.mrf.mxu0
      %1728 = vmatprep.mubr.bf16.mxu0 0
      %1729 = vmatmul.mubr.bf16.gmra.mxu0 %v1652
      %v1730 = vpop.f32.mrf.mxu0
      %v1731 = vadd.f32 %v1626, %v1730
      %v1732 = vpop.f32.mrf.mxu0
      %v1733 = vpop.f32.mrf.mxu0
      %v1734 = vadd.f32 %v1626, %v1733
      %v1735 = vpop.f32.mrf.mxu0
      %1736 = vmatprep.mubr.bf16.mxu0 0
      %1737 = vmatmul.mubr.bf16.gmra.mxu0 %v1654
      %v1738 = vpop.f32.mrf.mxu0
      %v1739 = vadd.f32 %v1626, %v1738
      %v1740 = vpop.f32.mrf.mxu0
      %v1741 = vpop.f32.mrf.mxu0
      %v1742 = vadd.f32 %v1626, %v1741
      %v1743 = vpop.f32.mrf.mxu0
      %1744 = vmatprep.mubr.bf16.mxu0 0
      %1745 = vmatmul.mubr.bf16.gmra.mxu0 %v1656
      %v1746 = vpop.f32.mrf.mxu0
      %v1747 = vadd.f32 %v1626, %v1746
      %v1748 = vpop.f32.mrf.mxu0
      %v1749 = vpop.f32.mrf.mxu0
      %v1750 = vadd.f32 %v1626, %v1749
      %v1751 = vpop.f32.mrf.mxu0
      %1752 = vmatprep.mubr.bf16.mxu0 0
      %1753 = vmatmul.mubr.bf16.gmra.mxu0 %v1658
      %v1754 = vpop.f32.mrf.mxu0
      %v1755 = vadd.f32 %v1626, %v1754
      %v1756 = vpop.f32.mrf.mxu0
      %v1757 = vpop.f32.mrf.mxu0
      %v1758 = vadd.f32 %v1626, %v1757
      %v1759 = vpop.f32.mrf.mxu0
      %1760 = vdwg.mxu0
      %vm1761 = vcmp.gt.f32.partialorder %v1699, 0.0
      %vm1762 = vcmp.gt.f32.partialorder %v1702, 0.0
      %vm1763 = vcmp.gt.f32.partialorder %v1707, 0.0
      %vm1764 = vcmp.gt.f32.partialorder %v1710, 0.0
      %vm1765 = vcmp.gt.f32.partialorder %v1715, 0.0
      %vm1766 = vcmp.gt.f32.partialorder %v1718, 0.0
      %vm1767 = vcmp.gt.f32.partialorder %v1723, 0.0
      %vm1768 = vcmp.gt.f32.partialorder %v1726, 0.0
      %vm1769 = vcmp.gt.f32.partialorder %v1731, 0.0
      %vm1770 = vcmp.gt.f32.partialorder %v1734, 0.0
      %vm1771 = vcmp.gt.f32.partialorder %v1739, 0.0
      %vm1772 = vcmp.gt.f32.partialorder %v1742, 0.0
      %vm1773 = vcmp.gt.f32.partialorder %v1747, 0.0
      %vm1774 = vcmp.gt.f32.partialorder %v1750, 0.0
      %vm1775 = vcmp.gt.f32.partialorder %v1755, 0.0
      %vm1776 = vcmp.gt.f32.partialorder %v1758, 0.0
      %v1777 = vld [vmem:[%s3] sm:$0x1]
      %v1779 = vlaneseq
      %v1780 = vshrl.u32 %v1779, 7
      %v1781 = vsub.s32 0, %v1780
      %v1782 = vrot.slane %v1777, %v1781
      %v1784 = vmul.f32 %v1782, %v1699
      %v1785 = vmul.f32 %v1782, %v1702
      %v1786 = vmul.f32 %v1782, %v1707
      %v1787 = vmul.f32 %v1782, %v1710
      %v1788 = vmul.f32 %v1782, %v1715
      %v1789 = vmul.f32 %v1782, %v1718
      %v1790 = vmul.f32 %v1782, %v1723
      %v1791 = vmul.f32 %v1782, %v1726
      %v1792 = vmul.f32 %v1782, %v1731
      %v1793 = vmul.f32 %v1782, %v1734
      %v1794 = vmul.f32 %v1782, %v1739
      %v1795 = vmul.f32 %v1782, %v1742
      %v1796 = vmul.f32 %v1782, %v1747
      %v1797 = vmul.f32 %v1782, %v1750
      %v1798 = vmul.f32 %v1782, %v1755
      %v1799 = vmul.f32 %v1782, %v1758
      %v1800 = vsel %vm1761, %v1699, %v1784
      %v1801 = vsel %vm1762, %v1702, %v1785
      %v1802 = vsel %vm1763, %v1707, %v1786
      %v1803 = vsel %vm1764, %v1710, %v1787
      %v1804 = vsel %vm1765, %v1715, %v1788
      %v1805 = vsel %vm1766, %v1718, %v1789
      %v1806 = vsel %vm1767, %v1723, %v1790
      %v1807 = vsel %vm1768, %v1726, %v1791
      %v1808 = vsel %vm1769, %v1731, %v1792
      %v1809 = vsel %vm1770, %v1734, %v1793
      %v1810 = vsel %vm1771, %v1739, %v1794
      %v1811 = vsel %vm1772, %v1742, %v1795
      %v1812 = vsel %vm1773, %v1747, %v1796
      %v1813 = vsel %vm1774, %v1750, %v1797
      %v1814 = vsel %vm1775, %v1755, %v1798
      %v1815 = vsel %vm1776, %v1758, %v1799
      %v1816 = vpack.c.bf16 %v1801, %v1800
      %v1817 = vpack.c.bf16 %v1803, %v1802
      %v1818 = vpack.c.bf16 %v1805, %v1804
      %v1819 = vpack.c.bf16 %v1807, %v1806
      %v1820 = vpack.c.bf16 %v1809, %v1808
      %v1821 = vpack.c.bf16 %v1811, %v1810
      %v1822 = vpack.c.bf16 %v1813, %v1812
      %v1823 = vpack.c.bf16 %v1815, %v1814
      %v1832 = vunpack.c.l.b16 %v1816
      %v1833 = vunpack.c.h.b16 %v1816
      %v1834 = vunpack.c.l.b16 %v1817
      %v1835 = vunpack.c.h.b16 %v1817
      %v1836 = vunpack.c.l.b16 %v1818
      %v1837 = vunpack.c.h.b16 %v1818
      %v1838 = vunpack.c.l.b16 %v1819
      %v1839 = vunpack.c.h.b16 %v1819
      %v1840 = vunpack.c.l.b16 %v1820
      %v1841 = vunpack.c.h.b16 %v1820
      %v1842 = vunpack.c.l.b16 %v1821
      %v1843 = vunpack.c.h.b16 %v1821
      %v1844 = vunpack.c.l.b16 %v1822
      %v1845 = vunpack.c.h.b16 %v1822
      %v1846 = vunpack.c.l.b16 %v1823
      %v1847 = vunpack.c.h.b16 %v1823
      %v1848 = vpack.c.b16 %v1832, %v1832
      %v1849 = vpack.c.b16 %v1833, %v1833
      %v1850 = vpack.c.b16 %v1834, %v1834
      %v1851 = vpack.c.b16 %v1835, %v1835
      %v1852 = vpack.c.b16 %v1836, %v1836
      %v1853 = vpack.c.b16 %v1837, %v1837
      %v1854 = vpack.c.b16 %v1838, %v1838
      %v1855 = vpack.c.b16 %v1839, %v1839
      %v1856 = vpack.c.b16 %v1840, %v1840
      %v1857 = vpack.c.b16 %v1841, %v1841
      %v1858 = vpack.c.b16 %v1842, %v1842
      %v1859 = vpack.c.b16 %v1843, %v1843
      %v1860 = vpack.c.b16 %v1844, %v1844
      %v1861 = vpack.c.b16 %v1845, %v1845
      %v1862 = vpack.c.b16 %v1846, %v1846
      %v1863 = vpack.c.b16 %v1847, %v1847
      %vm1880 = vcmask 125952
      %1881 = vst.msk [vmem:[%s219] sm:$0xf] %vm1880, %v1848
      %1882 = vst.msk [vmem:[%s219 + $0x4] sm:$0xf] %vm1880, %v1849
      %1883 = vst.msk [vmem:[%s219 + $0x8] sm:$0xf] %vm1880, %v1850
      %1884 = vst.msk [vmem:[%s219 + $0xc] sm:$0xf] %vm1880, %v1851
      %1885 = vst.msk [vmem:[%s219 + $0x10] sm:$0xf] %vm1880, %v1852
      %1886 = vst.msk [vmem:[%s219 + $0x14] sm:$0xf] %vm1880, %v1853
      %1887 = vst.msk [vmem:[%s219 + $0x18] sm:$0xf] %vm1880, %v1854
      %1888 = vst.msk [vmem:[%s219 + $0x1c] sm:$0xf] %vm1880, %v1855
      %1889 = vst.msk [vmem:[%s219 + $0x20] sm:$0xf] %vm1880, %v1856
      %1890 = vst.msk [vmem:[%s219 + $0x24] sm:$0xf] %vm1880, %v1857
      %1891 = vst.msk [vmem:[%s219 + $0x28] sm:$0xf] %vm1880, %v1858
      %1892 = vst.msk [vmem:[%s219 + $0x2c] sm:$0xf] %vm1880, %v1859
      %1893 = vst.msk [vmem:[%s219 + $0x30] sm:$0xf] %vm1880, %v1860
      %1894 = vst.msk [vmem:[%s219 + $0x34] sm:$0xf] %vm1880, %v1861
      %1895 = vst.msk [vmem:[%s219 + $0x38] sm:$0xf] %vm1880, %v1862
      %1896 = vst.msk [vmem:[%s219 + $0x3c] sm:$0xf] %vm1880, %v1863
      %s1897 = smul.u32 16, %s20
      %p1898 = scmp.lt.s32.totalorder %s19, 1
      %s1899 = scalar_select %p1898, %s19, 1
      %p1900 = scmp.lt.s32.totalorder %s1897, 31
      %s1901 = scalar_select %p1900, %s1897, 31
      %s1902 = smul.addr %s1899, 32
      %s1903 = sadd.s32 %s1901, %s1902
      %s1904 = smul.addr %s1903, 4
      %s1905 = scalar_lea.vmem %s4, %s1904
      // Predicated region
      $region37: #{tpu_custom_call.1} parent=35 // pred_check
        %p1906 = pneg %p136
      $region38: #{tpu_custom_call.1} parent=35 // pred_check_branch
        %1908 = sbr.rel (%p1906) target = $region40
      $region39: #{tpu_custom_call.1} parent=35 // pred_region
        %s1909 = smul.u32 16, %s20
      $region40: #{tpu_custom_call.1} parent=35 // pred_fallthru
        _
    $region36: #{tpu_custom_call.1} parent=5 // pred_fallthru
      _
    %p1910 = scmp.le.s32.totalorder 2, %s10
    // Predicated region
    $region41: #{tpu_custom_call.1} parent=5 // pred_check
      %p1911 = pneg %p1910
    $region42: #{tpu_custom_call.1} parent=5 // pred_check_branch
      %1913 = sbr.rel (%p1911) target = $region44
    $region43: #{tpu_custom_call.1} parent=5 // pred_region
      %s1914 = ssub.s32 %s10, 2
      // Predicated region
      $region45: #{tpu_custom_call.1} parent=43 // pred_check
        %p1915 = pneg %p142
      $region46: #{tpu_custom_call.1} parent=43 // pred_check_branch
        %1917 = sbr.rel (%p1915) target = $region48
      $region47: #{tpu_custom_call.1} parent=43 // pred_region
        %s1918 = smul.u32 16, %s22
        %p1919 = scmp.lt.s32.totalorder %s21, 1
        %s1920 = scalar_select %p1919, %s21, 1
        %p1921 = scmp.lt.s32.totalorder %s1918, 31
        %s1922 = scalar_select %p1921, %s1918, 31
        %s1923 = smul.addr %s1920, 32
        %s1924 = sadd.s32 %s1922, %s1923
        %s1925 = smul.addr %s1924, 4
        %s1926 = scalar_lea.vmem %s4, %s1925
      $region48: #{tpu_custom_call.1} parent=43 // pred_fallthru
        _
    $region44: #{tpu_custom_call.1} parent=5 // pred_fallthru
      _
  $region6: #{tpu_custom_call.1} parent=0 // loop_footer
    %s14 = sadd.s32 1, %s10
  $region7: #{tpu_custom_call.1} parent=0 // loop_footer_branch
    %9 = sbr.rel target = $region3
  $region8: #{tpu_custom_call.1} parent=0 // loop_exit
    _

</llo_original>
